<compile_context>
chip_gen: v7x
topology: tpu7x:2x2x1
jax: 0.10.0
libtpu: 0.0.40
codegen_flags: <defaults>
</compile_context>

<pallas_src>
import math

import jax
import jax.numpy as jnp
import numpy as np
from jax import lax
from jax.experimental import pallas as pl
from jax.experimental.pallas import tpu as pltpu

K = 7              # conv kernel size
P = (K - 1) // 2   # padding = 3


def spatial_gate_kernel(x_ref, b_ref, bn_ref, o_ref, pad_ref):
    # x_ref  : (1, C, H, W)     VMEM input block (one image)
    # b_ref  : (2, K, W, W)     VMEM banded conv matrices (W-boundary zeros folded in)
    # bn_ref : (2,)             SMEM [bn_scale, bn_bias] (eval-mode BN folded)
    # o_ref  : (1, C, H, W)     VMEM output block
    # pad_ref: (2, H + 2P, W)   VMEM scratch: row-zero-padded pooled maps
    _, C, H, W = x_ref.shape

    # ---- ChannelPool: streaming max / mean over C --------------------------
    x0 = x_ref[0, 0]

    def pool_body(c, carry):
        m, s = carry
        xc = x_ref[0, c]
        return jnp.maximum(m, xc), s + xc

    x_max, x_sum = lax.fori_loop(1, C, pool_body, (x0, x0), unroll=True)
    x_mean = x_sum * (1.0 / C)

    # ---- Row-zero-padded pooled maps in VMEM scratch ------------------------
    # The P zero rows above/below provide the conv's H-direction zero padding
    # for free; the W-direction zero padding is folded into b_ref's bands.
    pad_ref[...] = jnp.zeros_like(pad_ref)
    pad_ref[0, P:P + H, :] = x_max.astype(jnp.float32)
    pad_ref[1, P:P + H, :] = x_mean.astype(jnp.float32)

    # ---- 7x7 conv (2 -> 1 channel) as 2*K banded matmuls on the MXU ---------
    acc = jnp.zeros((H, W), jnp.float32)
    for c in range(2):            # static: fully unrolled, 14 vmatmul pushes
        for dh in range(K):
            acc = acc + jnp.dot(pad_ref[c, dh:dh + H, :], b_ref[c, dh],
                                preferred_element_type=jnp.float32)

    # ---- BatchNorm2d (eval mode, folded to scale/bias) + sigmoid gate -------
    bn_scale = bn_ref[0]
    bn_bias = bn_ref[1]
    scale = jax.nn.sigmoid(acc * bn_scale + bn_bias)      # (H, W)

    # ---- Apply gate to every input channel, streaming over C ----------------
    def gate_body(c, carry):
        o_ref[0, c] = (x_ref[0, c] * scale).astype(o_ref.dtype)
        return carry

    lax.fori_loop(0, C, gate_body, 0, unroll=True)


def make_banded_weights(w_oihw, width):
    """Fold a (1, 2, K, K) conv weight into (2, K, width, width) banded matrices.

    B[c, dh, j_in, j_out] = w[0, c, dh, j_in - j_out + P] inside the band, else 0,
    so `padded_rows[c, dh:dh+H, :] @ B[c, dh]` performs the dw sweep of the 7x7
    conv including the W-direction zero padding.
    """
    w = w_oihw[0].astype(jnp.float32)                      # (2, K, K)
    j_in = jnp.arange(width)[:, None]
    j_out = jnp.arange(width)[None, :]
    dw = j_in - j_out + P                                  # (width, width)
    valid = (dw >= 0) & (dw < K)
    taps = jnp.take(w, jnp.clip(dw, 0, K - 1), axis=2)     # (2, K, width, width)
    return jnp.where(valid[None, None], taps, 0.0)


def spatial_gate(x, w_oihw, bn_scale, bn_bias):
    N, C, H, W = x.shape
    b = make_banded_weights(w_oihw, W)                       # (2, K, W, W) f32
    bn = jnp.array([bn_scale, bn_bias], dtype=jnp.float32)   # (2,) SMEM scalars

    flops = (2 * N * C * H * W                 # channel pool (max + sum)
             + N * 2 * K * 2 * H * W * W       # banded-matmul conv
             + 4 * N * H * W                   # BN affine + sigmoid surroundings
             + N * C * H * W)                  # gating multiply
    bytes_accessed = (2 * N * C * H * W + 2 * K * W * W + 2) * 4
    cost = pl.CostEstimate(flops=flops, transcendentals=N * H * W,
                           bytes_accessed=bytes_accessed)

    return pl.pallas_call(
        spatial_gate_kernel,
        out_shape=jax.ShapeDtypeStruct((N, C, H, W), x.dtype),
        grid_spec=pltpu.PrefetchScalarGridSpec(
            num_scalar_prefetch=0,
            grid=(N,),
            in_specs=[
                # Full (C, H, W) image per grid step; H, W equal full array dims.
                # TODO(synk): for realistic C (256-1024) and v7x's 64 MiB VMEM, add a
                # C-tile grid axis (pool pass + gate pass) and a lane-dense (N,C,H*W)
                # store layout; kept 4-D here to avoid an in-kernel minor-dim reshape.
                pl.BlockSpec((1, C, H, W), lambda n: (n, 0, 0, 0)),
                pl.BlockSpec((2, K, W, W), lambda n: (0, 0, 0, 0)),
                pl.BlockSpec(memory_space=pltpu.MemorySpace.SMEM),
            ],
            out_specs=pl.BlockSpec((1, C, H, W), lambda n: (n, 0, 0, 0)),
            scratch_shapes=[pltpu.VMEM((2, H + 2 * P, W), jnp.float32)],
        ),
        compiler_params=pltpu.CompilerParams(
            dimension_semantics=("parallel",),    # batch axis shards across v7x's 2 TCs
            vmem_limit_bytes=32 * 1024 * 1024,
        ),
        cost_estimate=cost,
    )(x, b, bn)


def reference(x, w_oihw, bn_scale, bn_bias):
    """Pure-JAX reference matching the PyTorch forward (BN in eval mode)."""
    x_max = jnp.max(x, axis=1, keepdims=True)
    x_mean = jnp.mean(x, axis=1, keepdims=True)
    pooled = jnp.concatenate([x_max, x_mean], axis=1)          # (N, 2, H, W)
    y = jax.lax.conv_general_dilated(
        pooled, w_oihw, window_strides=(1, 1),
        padding=((P, P), (P, P)),
        dimension_numbers=("NCHW", "OIHW", "NCHW"))            # (N, 1, H, W)
    y = y * bn_scale + bn_bias
    return x * jax.nn.sigmoid(y)


if __name__ == "__main__":
    N, C, H, W = 2, 4, 16, 16
    key = jax.random.PRNGKey(0)
    kx, kw = jax.random.split(key)

    x = jax.random.normal(kx, (N, C, H, W), dtype=jnp.float32)

    # Conv2d(2, 1, 7, bias=False) weight, PyTorch-style kaiming-uniform bound.
    fan_in = 2 * K * K
    bound = 1.0 / math.sqrt(fan_in)
    w = jax.random.uniform(kw, (1, 2, K, K), dtype=jnp.float32,
                           minval=-bound, maxval=bound)

    # BatchNorm2d(1) eval-mode with default-initialized params/stats:
    # gamma=1, beta=0, running_mean=0, running_var=1, eps=1e-5 -> fold to scale/bias.
    # TODO(synk): training-mode BN (batch statistics) is not modeled; eval semantics used.
    eps = 1e-5
    gamma, beta, run_mean, run_var = 1.0, 0.0, 0.0, 1.0
    bn_scale = gamma / math.sqrt(run_var + eps)
    bn_bias = beta - run_mean * bn_scale

    out = spatial_gate(x, w, bn_scale, bn_bias)
    out = jax.block_until_ready(out)

    ref = reference(x, w, bn_scale, bn_bias)
    # Tolerance allows for MXU multi-pass f32 rounding in the in-kernel conv matmuls.
    np.testing.assert_allclose(np.asarray(out), np.asarray(ref),
                               rtol=1e-3, atol=1e-4)
    print("KERNEL_OK")
</pallas_src>

<mosaic_0001>
module attributes {stable_mosaic.version = 11 : i64} {
  func.func @spatial_gate_kernel(%arg0: i32, %arg1: memref<1x4x16x16xf32, #tpu.memory_space<vmem>>, %arg2: memref<2x7x16x16xf32, #tpu.memory_space<vmem>>, %arg3: memref<2xf32, #tpu.memory_space<smem>>, %arg4: memref<1x4x16x16xf32, #tpu.memory_space<vmem>>, %arg5: memref<2x22x16xf32, #tpu.memory_space<vmem>>) attributes {dimension_semantics = [#tpu.dimension_semantics<parallel>], iteration_bounds = array<i64: 2>, scalar_prefetch = 0 : i64, scratch_operands = 1 : i64, tpu.core_type = #tpu.core_type<tc>, window_params = [{transform_indices = @transform_0, window_bounds = array<i64: 1, 4, 16, 16>}, {pipeline_mode = #tpu.pipeline_mode<synchronous>, transform_indices = @transform_1, window_bounds = array<i64: 2, 7, 16, 16>}, {transform_indices = @transform_2, window_bounds = array<i64: 2>}, {transform_indices = @transform_3, window_bounds = array<i64: 1, 4, 16, 16>}]} {
    %c0 = arith.constant 0 : index
    %c0_0 = arith.constant 0 : index
    %c0_1 = arith.constant 0 : index
    %c0_2 = arith.constant 0 : index
    %0 = vector.load %arg1[%c0, %c0_0, %c0_1, %c0_2] : memref<1x4x16x16xf32, #tpu.memory_space<vmem>>, vector<1x1x16x16xf32>
    %1 = vector.shape_cast %0 : vector<1x1x16x16xf32> to vector<16x16xf32>
    %c1_i32 = arith.constant 1 : i32
    %c0_3 = arith.constant 0 : index
    %2 = arith.index_cast %c1_i32 : i32 to index
    %c0_4 = arith.constant 0 : index
    %c0_5 = arith.constant 0 : index
    %3 = vector.load %arg1[%c0_3, %2, %c0_4, %c0_5] : memref<1x4x16x16xf32, #tpu.memory_space<vmem>>, vector<1x1x16x16xf32>
    %4 = vector.shape_cast %3 : vector<1x1x16x16xf32> to vector<16x16xf32>
    %5 = arith.maximumf %1, %4 : vector<16x16xf32>
    %6 = arith.addf %1, %4 : vector<16x16xf32>
    %c2_i32 = arith.constant 2 : i32
    %c0_6 = arith.constant 0 : index
    %7 = arith.index_cast %c2_i32 : i32 to index
    %c0_7 = arith.constant 0 : index
    %c0_8 = arith.constant 0 : index
    %8 = vector.load %arg1[%c0_6, %7, %c0_7, %c0_8] : memref<1x4x16x16xf32, #tpu.memory_space<vmem>>, vector<1x1x16x16xf32>
    %9 = vector.shape_cast %8 : vector<1x1x16x16xf32> to vector<16x16xf32>
    %10 = arith.maximumf %5, %9 : vector<16x16xf32>
    %11 = arith.addf %6, %9 : vector<16x16xf32>
    %c3_i32 = arith.constant 3 : i32
    %c0_9 = arith.constant 0 : index
    %12 = arith.index_cast %c3_i32 : i32 to index
    %c0_10 = arith.constant 0 : index
    %c0_11 = arith.constant 0 : index
    %13 = vector.load %arg1[%c0_9, %12, %c0_10, %c0_11] : memref<1x4x16x16xf32, #tpu.memory_space<vmem>>, vector<1x1x16x16xf32>
    %14 = vector.shape_cast %13 : vector<1x1x16x16xf32> to vector<16x16xf32>
    %15 = arith.maximumf %10, %14 : vector<16x16xf32>
    %16 = arith.addf %11, %14 : vector<16x16xf32>
    %c3_i32_12 = arith.constant 3 : i32
    %cst = arith.constant 2.500000e-01 : f32
    %17 = vector.broadcast %cst : f32 to vector<16x16xf32>
    %18 = arith.mulf %16, %17 : vector<16x16xf32>
    %cst_13 = arith.constant 0.000000e+00 : f32
    %19 = vector.broadcast %cst_13 : f32 to vector<2x22x16xf32>
    %c0_14 = arith.constant 0 : index
    %c0_15 = arith.constant 0 : index
    %c0_16 = arith.constant 0 : index
    %20 = vector.load %arg5[%c0_14, %c0_15, %c0_16] : memref<2x22x16xf32, #tpu.memory_space<vmem>>, vector<2x22x16xf32>
    tpu.vector_store %arg5[%c0_14, %c0_15, %c0_16], %19 {strides = array<i32>} : memref<2x22x16xf32, #tpu.memory_space<vmem>>, vector<2x22x16xf32>,
    %c0_17 = arith.constant 0 : index
    %c3 = arith.constant 3 : index
    %c0_18 = arith.constant 0 : index
    %21 = vector.load %arg5[%c0_17, %c3, %c0_18] : memref<2x22x16xf32, #tpu.memory_space<vmem>>, vector<1x16x16xf32>
    %22 = vector.shape_cast %21 : vector<1x16x16xf32> to vector<16x16xf32>
    %23 = vector.shape_cast %15 : vector<16x16xf32> to vector<1x16x16xf32>
    tpu.vector_store %arg5[%c0_17, %c3, %c0_18], %23 {strides = array<i32>} : memref<2x22x16xf32, #tpu.memory_space<vmem>>, vector<1x16x16xf32>,
    %c1 = arith.constant 1 : index
    %c3_19 = arith.constant 3 : index
    %c0_20 = arith.constant 0 : index
    %24 = vector.load %arg5[%c1, %c3_19, %c0_20] : memref<2x22x16xf32, #tpu.memory_space<vmem>>, vector<1x16x16xf32>
    %25 = vector.shape_cast %24 : vector<1x16x16xf32> to vector<16x16xf32>
    %26 = vector.shape_cast %18 : vector<16x16xf32> to vector<1x16x16xf32>
    tpu.vector_store %arg5[%c1, %c3_19, %c0_20], %26 {strides = array<i32>} : memref<2x22x16xf32, #tpu.memory_space<vmem>>, vector<1x16x16xf32>,
    %cst_21 = arith.constant 0.000000e+00 : f32
    %27 = vector.broadcast %cst_21 : f32 to vector<16x16xf32>
    %c0_22 = arith.constant 0 : index
    %c0_23 = arith.constant 0 : index
    %c0_24 = arith.constant 0 : index
    %28 = vector.load %arg5[%c0_22, %c0_23, %c0_24] : memref<2x22x16xf32, #tpu.memory_space<vmem>>, vector<1x16x16xf32>
    %29 = vector.shape_cast %28 : vector<1x16x16xf32> to vector<16x16xf32>
    %c0_25 = arith.constant 0 : index
    %c0_26 = arith.constant 0 : index
    %c0_27 = arith.constant 0 : index
    %c0_28 = arith.constant 0 : index
    %30 = vector.load %arg2[%c0_25, %c0_26, %c0_27, %c0_28] : memref<2x7x16x16xf32, #tpu.memory_space<vmem>>, vector<1x1x16x16xf32>
    %31 = vector.shape_cast %30 : vector<1x1x16x16xf32> to vector<16x16xf32>
    %cst_29 = arith.constant dense<0.000000e+00> : vector<16x16xf32>
    %32 = tpu.matmul %29, %31, %cst_29 {dimension_numbers = #tpu.dot_dimension_numbers<[1], [0], [0], [1], [0, 0, 1, 1], [], []>} : vector<16x16xf32>, vector<16x16xf32>, vector<16x16xf32> -> vector<16x16xf32>
    %33 = arith.addf %27, %32 : vector<16x16xf32>
    %c0_30 = arith.constant 0 : index
    %c1_31 = arith.constant 1 : index
    %c0_32 = arith.constant 0 : index
    %34 = vector.load %arg5[%c0_30, %c1_31, %c0_32] : memref<2x22x16xf32, #tpu.memory_space<vmem>>, vector<1x16x16xf32>
    %35 = vector.shape_cast %34 : vector<1x16x16xf32> to vector<16x16xf32>
    %c0_33 = arith.constant 0 : index
    %c1_34 = arith.constant 1 : index
    %c0_35 = arith.constant 0 : index
    %c0_36 = arith.constant 0 : index
    %36 = vector.load %arg2[%c0_33, %c1_34, %c0_35, %c0_36] : memref<2x7x16x16xf32, #tpu.memory_space<vmem>>, vector<1x1x16x16xf32>
    %37 = vector.shape_cast %36 : vector<1x1x16x16xf32> to vector<16x16xf32>
    %cst_37 = arith.constant dense<0.000000e+00> : vector<16x16xf32>
    %38 = tpu.matmul %35, %37, %cst_37 {dimension_numbers = #tpu.dot_dimension_numbers<[1], [0], [0], [1], [0, 0, 1, 1], [], []>} : vector<16x16xf32>, vector<16x16xf32>, vector<16x16xf32> -> vector<16x16xf32>
    %39 = arith.addf %33, %38 : vector<16x16xf32>
    %c0_38 = arith.constant 0 : index
    %c2 = arith.constant 2 : index
    %c0_39 = arith.constant 0 : index
    %40 = vector.load %arg5[%c0_38, %c2, %c0_39] : memref<2x22x16xf32, #tpu.memory_space<vmem>>, vector<1x16x16xf32>
    %41 = vector.shape_cast %40 : vector<1x16x16xf32> to vector<16x16xf32>
    %c0_40 = arith.constant 0 : index
    %c2_41 = arith.constant 2 : index
    %c0_42 = arith.constant 0 : index
    %c0_43 = arith.constant 0 : index
    %42 = vector.load %arg2[%c0_40, %c2_41, %c0_42, %c0_43] : memref<2x7x16x16xf32, #tpu.memory_space<vmem>>, vector<1x1x16x16xf32>
    %43 = vector.shape_cast %42 : vector<1x1x16x16xf32> to vector<16x16xf32>
    %cst_44 = arith.constant dense<0.000000e+00> : vector<16x16xf32>
    %44 = tpu.matmul %41, %43, %cst_44 {dimension_numbers = #tpu.dot_dimension_numbers<[1], [0], [0], [1], [0, 0, 1, 1], [], []>} : vector<16x16xf32>, vector<16x16xf32>, vector<16x16xf32> -> vector<16x16xf32>
    %45 = arith.addf %39, %44 : vector<16x16xf32>
    %c0_45 = arith.constant 0 : index
    %c3_46 = arith.constant 3 : index
    %c0_47 = arith.constant 0 : index
    %46 = vector.load %arg5[%c0_45, %c3_46, %c0_47] : memref<2x22x16xf32, #tpu.memory_space<vmem>>, vector<1x16x16xf32>
    %47 = vector.shape_cast %46 : vector<1x16x16xf32> to vector<16x16xf32>
    %c0_48 = arith.constant 0 : index
    %c3_49 = arith.constant 3 : index
    %c0_50 = arith.constant 0 : index
    %c0_51 = arith.constant 0 : index
    %48 = vector.load %arg2[%c0_48, %c3_49, %c0_50, %c0_51] : memref<2x7x16x16xf32, #tpu.memory_space<vmem>>, vector<1x1x16x16xf32>
    %49 = vector.shape_cast %48 : vector<1x1x16x16xf32> to vector<16x16xf32>
    %cst_52 = arith.constant dense<0.000000e+00> : vector<16x16xf32>
    %50 = tpu.matmul %47, %49, %cst_52 {dimension_numbers = #tpu.dot_dimension_numbers<[1], [0], [0], [1], [0, 0, 1, 1], [], []>} : vector<16x16xf32>, vector<16x16xf32>, vector<16x16xf32> -> vector<16x16xf32>
    %51 = arith.addf %45, %50 : vector<16x16xf32>
    %c0_53 = arith.constant 0 : index
    %c4 = arith.constant 4 : index
    %c0_54 = arith.constant 0 : index
    %52 = vector.load %arg5[%c0_53, %c4, %c0_54] : memref<2x22x16xf32, #tpu.memory_space<vmem>>, vector<1x16x16xf32>
    %53 = vector.shape_cast %52 : vector<1x16x16xf32> to vector<16x16xf32>
    %c0_55 = arith.constant 0 : index
    %c4_56 = arith.constant 4 : index
    %c0_57 = arith.constant 0 : index
    %c0_58 = arith.constant 0 : index
    %54 = vector.load %arg2[%c0_55, %c4_56, %c0_57, %c0_58] : memref<2x7x16x16xf32, #tpu.memory_space<vmem>>, vector<1x1x16x16xf32>
    %55 = vector.shape_cast %54 : vector<1x1x16x16xf32> to vector<16x16xf32>
    %cst_59 = arith.constant dense<0.000000e+00> : vector<16x16xf32>
    %56 = tpu.matmul %53, %55, %cst_59 {dimension_numbers = #tpu.dot_dimension_numbers<[1], [0], [0], [1], [0, 0, 1, 1], [], []>} : vector<16x16xf32>, vector<16x16xf32>, vector<16x16xf32> -> vector<16x16xf32>
    %57 = arith.addf %51, %56 : vector<16x16xf32>
    %c0_60 = arith.constant 0 : index
    %c5 = arith.constant 5 : index
    %c0_61 = arith.constant 0 : index
    %58 = vector.load %arg5[%c0_60, %c5, %c0_61] : memref<2x22x16xf32, #tpu.memory_space<vmem>>, vector<1x16x16xf32>
    %59 = vector.shape_cast %58 : vector<1x16x16xf32> to vector<16x16xf32>
    %c0_62 = arith.constant 0 : index
    %c5_63 = arith.constant 5 : index
    %c0_64 = arith.constant 0 : index
    %c0_65 = arith.constant 0 : index
    %60 = vector.load %arg2[%c0_62, %c5_63, %c0_64, %c0_65] : memref<2x7x16x16xf32, #tpu.memory_space<vmem>>, vector<1x1x16x16xf32>
    %61 = vector.shape_cast %60 : vector<1x1x16x16xf32> to vector<16x16xf32>
    %cst_66 = arith.constant dense<0.000000e+00> : vector<16x16xf32>
    %62 = tpu.matmul %59, %61, %cst_66 {dimension_numbers = #tpu.dot_dimension_numbers<[1], [0], [0], [1], [0, 0, 1, 1], [], []>} : vector<16x16xf32>, vector<16x16xf32>, vector<16x16xf32> -> vector<16x16xf32>
    %63 = arith.addf %57, %62 : vector<16x16xf32>
    %c0_67 = arith.constant 0 : index
    %c6 = arith.constant 6 : index
    %c0_68 = arith.constant 0 : index
    %64 = vector.load %arg5[%c0_67, %c6, %c0_68] : memref<2x22x16xf32, #tpu.memory_space<vmem>>, vector<1x16x16xf32>
    %65 = vector.shape_cast %64 : vector<1x16x16xf32> to vector<16x16xf32>
    %c0_69 = arith.constant 0 : index
    %c6_70 = arith.constant 6 : index
    %c0_71 = arith.constant 0 : index
    %c0_72 = arith.constant 0 : index
    %66 = vector.load %arg2[%c0_69, %c6_70, %c0_71, %c0_72] : memref<2x7x16x16xf32, #tpu.memory_space<vmem>>, vector<1x1x16x16xf32>
    %67 = vector.shape_cast %66 : vector<1x1x16x16xf32> to vector<16x16xf32>
    %cst_73 = arith.constant dense<0.000000e+00> : vector<16x16xf32>
    %68 = tpu.matmul %65, %67, %cst_73 {dimension_numbers = #tpu.dot_dimension_numbers<[1], [0], [0], [1], [0, 0, 1, 1], [], []>} : vector<16x16xf32>, vector<16x16xf32>, vector<16x16xf32> -> vector<16x16xf32>
    %69 = arith.addf %63, %68 : vector<16x16xf32>
    %c1_74 = arith.constant 1 : index
    %c0_75 = arith.constant 0 : index
    %c0_76 = arith.constant 0 : index
    %70 = vector.load %arg5[%c1_74, %c0_75, %c0_76] : memref<2x22x16xf32, #tpu.memory_space<vmem>>, vector<1x16x16xf32>
    %71 = vector.shape_cast %70 : vector<1x16x16xf32> to vector<16x16xf32>
    %c1_77 = arith.constant 1 : index
    %c0_78 = arith.constant 0 : index
    %c0_79 = arith.constant 0 : index
    %c0_80 = arith.constant 0 : index
    %72 = vector.load %arg2[%c1_77, %c0_78, %c0_79, %c0_80] : memref<2x7x16x16xf32, #tpu.memory_space<vmem>>, vector<1x1x16x16xf32>
    %73 = vector.shape_cast %72 : vector<1x1x16x16xf32> to vector<16x16xf32>
    %cst_81 = arith.constant dense<0.000000e+00> : vector<16x16xf32>
    %74 = tpu.matmul %71, %73, %cst_81 {dimension_numbers = #tpu.dot_dimension_numbers<[1], [0], [0], [1], [0, 0, 1, 1], [], []>} : vector<16x16xf32>, vector<16x16xf32>, vector<16x16xf32> -> vector<16x16xf32>
    %75 = arith.addf %69, %74 : vector<16x16xf32>
    %c1_82 = arith.constant 1 : index
    %c1_83 = arith.constant 1 : index
    %c0_84 = arith.constant 0 : index
    %76 = vector.load %arg5[%c1_82, %c1_83, %c0_84] : memref<2x22x16xf32, #tpu.memory_space<vmem>>, vector<1x16x16xf32>
    %77 = vector.shape_cast %76 : vector<1x16x16xf32> to vector<16x16xf32>
    %c1_85 = arith.constant 1 : index
    %c1_86 = arith.constant 1 : index
    %c0_87 = arith.constant 0 : index
    %c0_88 = arith.constant 0 : index
    %78 = vector.load %arg2[%c1_85, %c1_86, %c0_87, %c0_88] : memref<2x7x16x16xf32, #tpu.memory_space<vmem>>, vector<1x1x16x16xf32>
    %79 = vector.shape_cast %78 : vector<1x1x16x16xf32> to vector<16x16xf32>
    %cst_89 = arith.constant dense<0.000000e+00> : vector<16x16xf32>
    %80 = tpu.matmul %77, %79, %cst_89 {dimension_numbers = #tpu.dot_dimension_numbers<[1], [0], [0], [1], [0, 0, 1, 1], [], []>} : vector<16x16xf32>, vector<16x16xf32>, vector<16x16xf32> -> vector<16x16xf32>
    %81 = arith.addf %75, %80 : vector<16x16xf32>
    %c1_90 = arith.constant 1 : index
    %c2_91 = arith.constant 2 : index
    %c0_92 = arith.constant 0 : index
    %82 = vector.load %arg5[%c1_90, %c2_91, %c0_92] : memref<2x22x16xf32, #tpu.memory_space<vmem>>, vector<1x16x16xf32>
    %83 = vector.shape_cast %82 : vector<1x16x16xf32> to vector<16x16xf32>
    %c1_93 = arith.constant 1 : index
    %c2_94 = arith.constant 2 : index
    %c0_95 = arith.constant 0 : index
    %c0_96 = arith.constant 0 : index
    %84 = vector.load %arg2[%c1_93, %c2_94, %c0_95, %c0_96] : memref<2x7x16x16xf32, #tpu.memory_space<vmem>>, vector<1x1x16x16xf32>
    %85 = vector.shape_cast %84 : vector<1x1x16x16xf32> to vector<16x16xf32>
    %cst_97 = arith.constant dense<0.000000e+00> : vector<16x16xf32>
    %86 = tpu.matmul %83, %85, %cst_97 {dimension_numbers = #tpu.dot_dimension_numbers<[1], [0], [0], [1], [0, 0, 1, 1], [], []>} : vector<16x16xf32>, vector<16x16xf32>, vector<16x16xf32> -> vector<16x16xf32>
    %87 = arith.addf %81, %86 : vector<16x16xf32>
    %c1_98 = arith.constant 1 : index
    %c3_99 = arith.constant 3 : index
    %c0_100 = arith.constant 0 : index
    %88 = vector.load %arg5[%c1_98, %c3_99, %c0_100] : memref<2x22x16xf32, #tpu.memory_space<vmem>>, vector<1x16x16xf32>
    %89 = vector.shape_cast %88 : vector<1x16x16xf32> to vector<16x16xf32>
    %c1_101 = arith.constant 1 : index
    %c3_102 = arith.constant 3 : index
    %c0_103 = arith.constant 0 : index
    %c0_104 = arith.constant 0 : index
    %90 = vector.load %arg2[%c1_101, %c3_102, %c0_103, %c0_104] : memref<2x7x16x16xf32, #tpu.memory_space<vmem>>, vector<1x1x16x16xf32>
    %91 = vector.shape_cast %90 : vector<1x1x16x16xf32> to vector<16x16xf32>
    %cst_105 = arith.constant dense<0.000000e+00> : vector<16x16xf32>
    %92 = tpu.matmul %89, %91, %cst_105 {dimension_numbers = #tpu.dot_dimension_numbers<[1], [0], [0], [1], [0, 0, 1, 1], [], []>} : vector<16x16xf32>, vector<16x16xf32>, vector<16x16xf32> -> vector<16x16xf32>
    %93 = arith.addf %87, %92 : vector<16x16xf32>
    %c1_106 = arith.constant 1 : index
    %c4_107 = arith.constant 4 : index
    %c0_108 = arith.constant 0 : index
    %94 = vector.load %arg5[%c1_106, %c4_107, %c0_108] : memref<2x22x16xf32, #tpu.memory_space<vmem>>, vector<1x16x16xf32>
    %95 = vector.shape_cast %94 : vector<1x16x16xf32> to vector<16x16xf32>
    %c1_109 = arith.constant 1 : index
    %c4_110 = arith.constant 4 : index
    %c0_111 = arith.constant 0 : index
    %c0_112 = arith.constant 0 : index
    %96 = vector.load %arg2[%c1_109, %c4_110, %c0_111, %c0_112] : memref<2x7x16x16xf32, #tpu.memory_space<vmem>>, vector<1x1x16x16xf32>
    %97 = vector.shape_cast %96 : vector<1x1x16x16xf32> to vector<16x16xf32>
    %cst_113 = arith.constant dense<0.000000e+00> : vector<16x16xf32>
    %98 = tpu.matmul %95, %97, %cst_113 {dimension_numbers = #tpu.dot_dimension_numbers<[1], [0], [0], [1], [0, 0, 1, 1], [], []>} : vector<16x16xf32>, vector<16x16xf32>, vector<16x16xf32> -> vector<16x16xf32>
    %99 = arith.addf %93, %98 : vector<16x16xf32>
    %c1_114 = arith.constant 1 : index
    %c5_115 = arith.constant 5 : index
    %c0_116 = arith.constant 0 : index
    %100 = vector.load %arg5[%c1_114, %c5_115, %c0_116] : memref<2x22x16xf32, #tpu.memory_space<vmem>>, vector<1x16x16xf32>
    %101 = vector.shape_cast %100 : vector<1x16x16xf32> to vector<16x16xf32>
    %c1_117 = arith.constant 1 : index
    %c5_118 = arith.constant 5 : index
    %c0_119 = arith.constant 0 : index
    %c0_120 = arith.constant 0 : index
    %102 = vector.load %arg2[%c1_117, %c5_118, %c0_119, %c0_120] : memref<2x7x16x16xf32, #tpu.memory_space<vmem>>, vector<1x1x16x16xf32>
    %103 = vector.shape_cast %102 : vector<1x1x16x16xf32> to vector<16x16xf32>
    %cst_121 = arith.constant dense<0.000000e+00> : vector<16x16xf32>
    %104 = tpu.matmul %101, %103, %cst_121 {dimension_numbers = #tpu.dot_dimension_numbers<[1], [0], [0], [1], [0, 0, 1, 1], [], []>} : vector<16x16xf32>, vector<16x16xf32>, vector<16x16xf32> -> vector<16x16xf32>
    %105 = arith.addf %99, %104 : vector<16x16xf32>
    %c1_122 = arith.constant 1 : index
    %c6_123 = arith.constant 6 : index
    %c0_124 = arith.constant 0 : index
    %106 = vector.load %arg5[%c1_122, %c6_123, %c0_124] : memref<2x22x16xf32, #tpu.memory_space<vmem>>, vector<1x16x16xf32>
    %107 = vector.shape_cast %106 : vector<1x16x16xf32> to vector<16x16xf32>
    %c1_125 = arith.constant 1 : index
    %c6_126 = arith.constant 6 : index
    %c0_127 = arith.constant 0 : index
    %c0_128 = arith.constant 0 : index
    %108 = vector.load %arg2[%c1_125, %c6_126, %c0_127, %c0_128] : memref<2x7x16x16xf32, #tpu.memory_space<vmem>>, vector<1x1x16x16xf32>
    %109 = vector.shape_cast %108 : vector<1x1x16x16xf32> to vector<16x16xf32>
    %cst_129 = arith.constant dense<0.000000e+00> : vector<16x16xf32>
    %110 = tpu.matmul %107, %109, %cst_129 {dimension_numbers = #tpu.dot_dimension_numbers<[1], [0], [0], [1], [0, 0, 1, 1], [], []>} : vector<16x16xf32>, vector<16x16xf32>, vector<16x16xf32> -> vector<16x16xf32>
    %111 = arith.addf %105, %110 : vector<16x16xf32>
    %c0_130 = arith.constant 0 : index
    %112 = memref.load %arg3[%c0_130] : memref<2xf32, #tpu.memory_space<smem>>
    %c1_131 = arith.constant 1 : index
    %113 = memref.load %arg3[%c1_131] : memref<2xf32, #tpu.memory_space<smem>>
    %114 = vector.broadcast %112 : f32 to vector<16x16xf32>
    %115 = arith.mulf %111, %114 : vector<16x16xf32>
    %116 = vector.broadcast %113 : f32 to vector<16x16xf32>
    %117 = arith.addf %115, %116 : vector<16x16xf32>
    %118 = arith.negf %117 : vector<16x16xf32>
    %119 = math.exp %118 : vector<16x16xf32>
    %cst_132 = arith.constant 1.000000e+00 : f32
    %120 = vector.broadcast %cst_132 : f32 to vector<16x16xf32>
    %121 = arith.addf %120, %119 : vector<16x16xf32>
    %122 = arith.divf %120, %121 : vector<16x16xf32>
    %c0_i32 = arith.constant 0 : i32
    %c0_133 = arith.constant 0 : index
    %123 = arith.index_cast %c0_i32 : i32 to index
    %c0_134 = arith.constant 0 : index
    %c0_135 = arith.constant 0 : index
    %124 = vector.load %arg1[%c0_133, %123, %c0_134, %c0_135] : memref<1x4x16x16xf32, #tpu.memory_space<vmem>>, vector<1x1x16x16xf32>
    %125 = vector.shape_cast %124 : vector<1x1x16x16xf32> to vector<16x16xf32>
    %126 = arith.mulf %125, %122 : vector<16x16xf32>
    %c0_136 = arith.constant 0 : index
    %127 = arith.index_cast %c0_i32 : i32 to index
    %c0_137 = arith.constant 0 : index
    %c0_138 = arith.constant 0 : index
    %128 = vector.load %arg4[%c0_136, %127, %c0_137, %c0_138] : memref<1x4x16x16xf32, #tpu.memory_space<vmem>>, vector<1x1x16x16xf32>
    %129 = vector.shape_cast %128 : vector<1x1x16x16xf32> to vector<16x16xf32>
    %130 = vector.shape_cast %126 : vector<16x16xf32> to vector<1x1x16x16xf32>
    tpu.vector_store %arg4[%c0_136, %127, %c0_137, %c0_138], %130 {strides = array<i32>} : memref<1x4x16x16xf32, #tpu.memory_space<vmem>>, vector<1x1x16x16xf32>,
    %c1_i32_139 = arith.constant 1 : i32
    %c0_140 = arith.constant 0 : index
    %131 = arith.index_cast %c1_i32_139 : i32 to index
    %c0_141 = arith.constant 0 : index
    %c0_142 = arith.constant 0 : index
    %132 = vector.load %arg1[%c0_140, %131, %c0_141, %c0_142] : memref<1x4x16x16xf32, #tpu.memory_space<vmem>>, vector<1x1x16x16xf32>
    %133 = vector.shape_cast %132 : vector<1x1x16x16xf32> to vector<16x16xf32>
    %134 = arith.mulf %133, %122 : vector<16x16xf32>
    %c0_143 = arith.constant 0 : index
    %135 = arith.index_cast %c1_i32_139 : i32 to index
    %c0_144 = arith.constant 0 : index
    %c0_145 = arith.constant 0 : index
    %136 = vector.load %arg4[%c0_143, %135, %c0_144, %c0_145] : memref<1x4x16x16xf32, #tpu.memory_space<vmem>>, vector<1x1x16x16xf32>
    %137 = vector.shape_cast %136 : vector<1x1x16x16xf32> to vector<16x16xf32>
    %138 = vector.shape_cast %134 : vector<16x16xf32> to vector<1x1x16x16xf32>
    tpu.vector_store %arg4[%c0_143, %135, %c0_144, %c0_145], %138 {strides = array<i32>} : memref<1x4x16x16xf32, #tpu.memory_space<vmem>>, vector<1x1x16x16xf32>,
    %c2_i32_146 = arith.constant 2 : i32
    %c0_147 = arith.constant 0 : index
    %139 = arith.index_cast %c2_i32_146 : i32 to index
    %c0_148 = arith.constant 0 : index
    %c0_149 = arith.constant 0 : index
    %140 = vector.load %arg1[%c0_147, %139, %c0_148, %c0_149] : memref<1x4x16x16xf32, #tpu.memory_space<vmem>>, vector<1x1x16x16xf32>
    %141 = vector.shape_cast %140 : vector<1x1x16x16xf32> to vector<16x16xf32>
    %142 = arith.mulf %141, %122 : vector<16x16xf32>
    %c0_150 = arith.constant 0 : index
    %143 = arith.index_cast %c2_i32_146 : i32 to index
    %c0_151 = arith.constant 0 : index
    %c0_152 = arith.constant 0 : index
    %144 = vector.load %arg4[%c0_150, %143, %c0_151, %c0_152] : memref<1x4x16x16xf32, #tpu.memory_space<vmem>>, vector<1x1x16x16xf32>
    %145 = vector.shape_cast %144 : vector<1x1x16x16xf32> to vector<16x16xf32>
    %146 = vector.shape_cast %142 : vector<16x16xf32> to vector<1x1x16x16xf32>
    tpu.vector_store %arg4[%c0_150, %143, %c0_151, %c0_152], %146 {strides = array<i32>} : memref<1x4x16x16xf32, #tpu.memory_space<vmem>>, vector<1x1x16x16xf32>,
    %c3_i32_153 = arith.constant 3 : i32
    %c0_154 = arith.constant 0 : index
    %147 = arith.index_cast %c3_i32_153 : i32 to index
    %c0_155 = arith.constant 0 : index
    %c0_156 = arith.constant 0 : index
    %148 = vector.load %arg1[%c0_154, %147, %c0_155, %c0_156] : memref<1x4x16x16xf32, #tpu.memory_space<vmem>>, vector<1x1x16x16xf32>
    %149 = vector.shape_cast %148 : vector<1x1x16x16xf32> to vector<16x16xf32>
    %150 = arith.mulf %149, %122 : vector<16x16xf32>
    %c0_157 = arith.constant 0 : index
    %151 = arith.index_cast %c3_i32_153 : i32 to index
    %c0_158 = arith.constant 0 : index
    %c0_159 = arith.constant 0 : index
    %152 = vector.load %arg4[%c0_157, %151, %c0_158, %c0_159] : memref<1x4x16x16xf32, #tpu.memory_space<vmem>>, vector<1x1x16x16xf32>
    %153 = vector.shape_cast %152 : vector<1x1x16x16xf32> to vector<16x16xf32>
    %154 = vector.shape_cast %150 : vector<16x16xf32> to vector<1x1x16x16xf32>
    tpu.vector_store %arg4[%c0_157, %151, %c0_158, %c0_159], %154 {strides = array<i32>} : memref<1x4x16x16xf32, #tpu.memory_space<vmem>>, vector<1x1x16x16xf32>,
    %c4_i32 = arith.constant 4 : i32
    return
  }
  func.func @transform_0(%arg0: i32) -> (i32, i32, i32, i32) {
    %c0_i32 = arith.constant 0 : i32
    %c0_i32_0 = arith.constant 0 : i32
    %c0_i32_1 = arith.constant 0 : i32
    %c0_i32_2 = arith.constant 0 : i32
    return %arg0, %c0_i32, %c0_i32_0, %c0_i32_1 : i32, i32, i32, i32
  }
  func.func @transform_1(%arg0: i32) -> (i32, i32, i32, i32) {
    %c0_i32 = arith.constant 0 : i32
    %c0_i32_0 = arith.constant 0 : i32
    %c0_i32_1 = arith.constant 0 : i32
    %c0_i32_2 = arith.constant 0 : i32
    %c0_i32_3 = arith.constant 0 : i32
    return %c0_i32, %c0_i32_0, %c0_i32_1, %c0_i32_2 : i32, i32, i32, i32
  }
  func.func @transform_2(%arg0: i32) -> i32 {
    %c0_i32 = arith.constant 0 : i32
    %c0_i32_0 = arith.constant 0 : i32
    return %c0_i32 : i32
  }
  func.func @transform_3(%arg0: i32) -> (i32, i32, i32, i32) {
    %c0_i32 = arith.constant 0 : i32
    %c0_i32_0 = arith.constant 0 : i32
    %c0_i32_1 = arith.constant 0 : i32
    %c0_i32_2 = arith.constant 0 : i32
    return %arg0, %c0_i32, %c0_i32_0, %c0_i32_1 : i32, i32, i32, i32
  }
}

</mosaic_0001>

<llo_original>
// kernel: tpu_custom_call.1
$region0: #{tpu_custom_call.1}
  #allocation0 [shape = 'u32[]', space=smem, size = 0x4, offset = 0x4, fixed_abs, tag = 'smem constant byte address 0x4 - core index']
  #allocation1 [shape = 'u32[144,128]{1,0:T(1,128)}', space=vmem, size = 0x12000, scoped, tag = 'internal scratch']
  #allocation2 [shape = 'f32[2,22,16]{2,1,0:T(8,128)}', space=vmem, size = 0x6000, scoped, tag = 'scratch operand']
  %s0 = inlined_call_operand.hbm [shape: f32[2,4,16,16], index: 0, kind: input, shape index: {}]
  %s1 = inlined_call_operand.hbm [shape: f32[2,7,16,16], index: 1, kind: input, shape index: {}]
  %s2 = inlined_call_operand.vmem [shape: f32[2], index: 2, kind: input, shape index: {}]
  %s3 = inlined_call_operand.hbm [shape: f32[2,4,16,16], index: 3, kind: output, shape index: {}]
  %s4 = sld [smem:[#allocation0]]
  $region57: #{tpu_custom_call.1} parent=0
    _
  %s6 = ssub.s32 1, %s4
  %s7 = scalar_select 0, %s6, %s4
  $region1: #{tpu_custom_call.1} parent=0
    #allocation3 [shape = 'u8[65536]{0}', space=vmem, size = 0x10000, scoped, tag = 'input window, operand 0']
    #allocation4 [shape = 's32[2]{0}', space=sflag, size = 0x8, scoped, tag = 'scoped memory for tpu_custom_call.1']
    #allocation5 [shape = 's32[2]{0}', space=sflag, size = 0x8, scoped, tag = 'scoped memory for tpu_custom_call.1']
    #allocation6 [shape = 's32[2]{0}', space=sflag, size = 0x8, scoped, tag = 'scoped memory for tpu_custom_call.1']
    #allocation7 [shape = 'u8[114688]{0}', space=vmem, size = 0x1c000, scoped, tag = 'input window, operand 1, single buffered']
    #allocation8 [shape = 's32[1]{0}', space=sflag, size = 0x4, scoped, tag = 'scoped memory for tpu_custom_call.1']
    #allocation9 [shape = 'u8[512]{0}', space=smem, size = 0x200, scoped, tag = 'input window, operand 2, single buffered']
    #allocation10 [shape = 'u8[65536]{0}', space=vmem, size = 0x10000, scoped, tag = 'output window, operand 0']
    %8 = vsyncpa [#allocation4], 0
    %s9 = scalar_lea.sflag [#allocation4], 1
    %10 = vsyncpa %s9, 0
    %11 = vsyncpa [#allocation8], 0
    %12 = vsyncpa [#allocation6], 0
    %13 = vsyncpa [#allocation5], 0
    %s14 = scalar_lea.sflag [#allocation5], 1
    %15 = vsyncpa %s14, 0
    loop: start=0, step=1, limit=4
    $region2: #{tpu_custom_call.1} parent=1 // loop_pre_header
      _
    $region3: #{tpu_custom_call.1} parent=1 // loop_header
      %s17 = sphi 0, %s21
      %p18 = scmp.ge.s32.totalorder %s17, 4
      %s27 = sphi 0, %s29
      %s30 = sphi 0, %s27
      %s31 = sphi 0, %s30
      %s47 = sphi 0, %s31
      %s51 = sphi 0, %s51
      %s53 = sphi 0, %s51
      %s54 = sphi 0, %s53
      %s68 = sphi 0, %s54
      %s72 = sphi 0, %s72
      %s74 = sphi 0, %s72
      %s75 = sphi 0, %s74
      %s89 = sphi 0, %s75
      %s95 = sphi 0, %s97
      %s98 = sphi 0, %s95
      %s99 = sphi 0, %s98
      %s115 = sphi 0, %s99
    $region4: #{tpu_custom_call.1} parent=1 // loop_header_branch
      %20 = sbr.rel (%p18) target = $region8
    $region5: #{tpu_custom_call.1} parent=1 // loop_body
      %s22 = ssub.s32 %s17, 1
      %s23 = ssub.s32 %s17, 2
      %s24 = sadd.s32 %s17, 1
      %s25 = ssub.s32 %s17, %s24
      %p26 = scmp.eq.s32.totalorder %s25, 0
      %s28 = sadd.s32 %s27, 1
      %s29 = scalar_select %p26, %s27, %s28
      %p32 = pneg %p26
      %p33 = scmp.eq.s32.totalorder %s17, 1
      %p34 = por %p32, %p33
      %p35 = scmp.ne.s32.totalorder %s27, %s30
      %p36 = scmp.eq.s32.totalorder %s17, 0
      %p37 = por %p35, %p36
      %p38 = scmp.ne.s32.totalorder %s27, %s30
      %p39 = scmp.eq.s32.totalorder %s22, 1
      %p40 = por %p38, %p39
      %p41 = scmp.ne.s32.totalorder %s30, %s31
      %p42 = scmp.eq.s32.totalorder %s22, 0
      %p43 = por %p41, %p42
      %p44 = scmp.ne.s32.totalorder %s30, %s31
      %p45 = scmp.eq.s32.totalorder %s23, 1
      %p46 = por %p44, %p45
      %p48 = scmp.ne.s32.totalorder %s31, %s47
      %p49 = scmp.eq.s32.totalorder %s23, 0
      %p50 = por %p48, %p49
      %s52 = sadd.s32 %s51, 1
      %p55 = scmp.eq.s32.totalorder %s17, 1
      %p56 = scmp.ne.s32.totalorder %s51, %s53
      %p57 = scmp.eq.s32.totalorder %s17, 0
      %p58 = por %p56, %p57
      %p59 = scmp.ne.s32.totalorder %s51, %s53
      %p60 = scmp.eq.s32.totalorder %s22, 1
      %p61 = por %p59, %p60
      %p62 = scmp.ne.s32.totalorder %s53, %s54
      %p63 = scmp.eq.s32.totalorder %s22, 0
      %p64 = por %p62, %p63
      %p65 = scmp.ne.s32.totalorder %s53, %s54
      %p66 = scmp.eq.s32.totalorder %s23, 1
      %p67 = por %p65, %p66
      %p69 = scmp.ne.s32.totalorder %s54, %s68
      %p70 = scmp.eq.s32.totalorder %s23, 0
      %p71 = por %p69, %p70
      %s73 = sadd.s32 %s72, 1
      %p76 = scmp.eq.s32.totalorder %s17, 1
      %p77 = scmp.ne.s32.totalorder %s72, %s74
      %p78 = scmp.eq.s32.totalorder %s17, 0
      %p79 = por %p77, %p78
      %p80 = scmp.ne.s32.totalorder %s72, %s74
      %p81 = scmp.eq.s32.totalorder %s22, 1
      %p82 = por %p80, %p81
      %p83 = scmp.ne.s32.totalorder %s74, %s75
      %p84 = scmp.eq.s32.totalorder %s22, 0
      %p85 = por %p83, %p84
      %p86 = scmp.ne.s32.totalorder %s74, %s75
      %p87 = scmp.eq.s32.totalorder %s23, 1
      %p88 = por %p86, %p87
      %p90 = scmp.ne.s32.totalorder %s75, %s89
      %p91 = scmp.eq.s32.totalorder %s23, 0
      %p92 = por %p90, %p91
      %s93 = ssub.s32 %s17, %s24
      %p94 = scmp.eq.s32.totalorder %s93, 0
      %s96 = sadd.s32 %s95, 1
      %s97 = scalar_select %p94, %s95, %s96
      %p100 = pneg %p94
      %p101 = scmp.eq.s32.totalorder %s17, 1
      %p102 = por %p100, %p101
      %p103 = scmp.ne.s32.totalorder %s95, %s98
      %p104 = scmp.eq.s32.totalorder %s17, 0
      %p105 = por %p103, %p104
      %p106 = scmp.ne.s32.totalorder %s95, %s98
      %p107 = scmp.eq.s32.totalorder %s22, 1
      %p108 = por %p106, %p107
      %p109 = scmp.ne.s32.totalorder %s98, %s99
      %p110 = scmp.eq.s32.totalorder %s22, 0
      %p111 = por %p109, %p110
      %p112 = scmp.ne.s32.totalorder %s98, %s99
      %p113 = scmp.eq.s32.totalorder %s23, 1
      %p114 = por %p112, %p113
      %p116 = scmp.ne.s32.totalorder %s99, %s115
      %p117 = scmp.eq.s32.totalorder %s23, 0
      %p118 = por %p116, %p117
      %p119 = scmp.le.s32.totalorder 1, %s17
      %p120 = scmp.lt.s32.totalorder %s17, 3
      %p121 = pnand %p119, %p120
      %p122 = pneg %p121
      // Predicated region
      $region9: #{tpu_custom_call.1} parent=5 // pred_check
        _
      $region10: #{tpu_custom_call.1} parent=5 // pred_check_branch
        %124 = sbr.rel (%p121) target = $region12
      $region11: #{tpu_custom_call.1} parent=5 // pred_region
        %s125 = ssub.s32 %s17, 1
        // Predicated region
        $region13: #{tpu_custom_call.1} parent=11 // pred_check
          %p126 = pneg %p64
        $region14: #{tpu_custom_call.1} parent=11 // pred_check_branch
          %128 = sbr.rel (%p126) target = $region16
        $region15: #{tpu_custom_call.1} parent=11 // pred_region
          %s130 = ssub.s32 3584, 3584
          %131 = vsyncadd [#allocation8], %s130
          %s132 = sshll.u32 [#allocation7], 4
          %s133 = int_to_ptr.vmem [resolvable:$true] %s132
          %138 = dma.hbm_to_vmem [thread:$0]  %s1, 3584, %s133, [#allocation8], 128, 128, 8
        $region16: #{tpu_custom_call.1} parent=11 // pred_fallthru
          _
        // Predicated region
        $region17: #{tpu_custom_call.1} parent=11 // pred_check
          %p139 = pneg %p85
        $region18: #{tpu_custom_call.1} parent=11 // pred_check_branch
          %141 = sbr.rel (%p139) target = $region20
        $region19: #{tpu_custom_call.1} parent=11 // pred_region
          %s143 = ssub.s32 16, 16
          %144 = vsyncadd [#allocation6], %s143
          %s146 = sshll.u32 %s2, 4
          %s147 = int_to_ptr.vmem [resolvable:$true] %s146
          %149 = dma.vmem_to_smem %s147, 16, [#allocation9], [#allocation6]
        $region20: #{tpu_custom_call.1} parent=11 // pred_fallthru
          _
      $region12: #{tpu_custom_call.1} parent=5 // pred_fallthru
        _
      %p150 = scmp.lt.s32.totalorder %s17, 2
      // Predicated region
      $region21: #{tpu_custom_call.1} parent=5 // pred_check
        %p151 = pneg %p150
      $region22: #{tpu_custom_call.1} parent=5 // pred_check_branch
        %153 = sbr.rel (%p151) target = $region24
      $region23: #{tpu_custom_call.1} parent=5 // pred_region
        // Predicated region
        $region25: #{tpu_custom_call.1} parent=23 // pred_check
          %p154 = pneg %p37
        $region26: #{tpu_custom_call.1} parent=23 // pred_check_branch
          %156 = sbr.rel (%p154) target = $region28
        $region27: #{tpu_custom_call.1} parent=23 // pred_region
          %s157 = sand.u32 %s27, 1
          %s158 = scalar_lea.sflag [#allocation4], %s157
          %s159 = sand.u32 %s27, 1
          %s160 = smul.addr %s159, 64
          %s161 = scalar_lea.vmem [#allocation3], %s160
          %s163 = ssub.s32 1024, 1024
          %164 = vsyncadd %s158, %s163
          %s165 = smul.addr %s17, 8
          %s166 = smul.addr %s165, 128
          %s167 = scalar_lea.hbm %s0, %s166
          %s168 = sshll.u32 %s161, 4
          %s169 = int_to_ptr.vmem [resolvable:$true] %s168
          %174 = dma.hbm_to_vmem [thread:$0]  %s167, 1024, %s169, %s158, 128, 128, 8
        $region28: #{tpu_custom_call.1} parent=23 // pred_fallthru
          _
      $region24: #{tpu_custom_call.1} parent=5 // pred_fallthru
        _
      %p175 = scmp.le.s32.totalorder 1, %s17
      %p176 = scmp.lt.s32.totalorder %s17, 3
      %p177 = pnand %p175, %p176
      %p178 = pneg %p177
      // Predicated region
      $region29: #{tpu_custom_call.1} parent=5 // pred_check
        _
      $region30: #{tpu_custom_call.1} parent=5 // pred_check_branch
        %180 = sbr.rel (%p177) target = $region32
      $region31: #{tpu_custom_call.1} parent=5 // pred_region
        %s181 = ssub.s32 %s17, 1
        %s182 = sand.u32 %s30, 1
        %s183 = scalar_lea.sflag [#allocation4], %s182
        %s184 = sand.u32 %s30, 1
        %s185 = smul.addr %s184, 64
        %s186 = scalar_lea.vmem [#allocation3], %s185
        // Predicated region
        $region33: #{tpu_custom_call.1} parent=31 // pred_check
          %p187 = pneg %p43
        $region34: #{tpu_custom_call.1} parent=31 // pred_check_branch
          %189 = sbr.rel (%p187) target = $region36
        $region35: #{tpu_custom_call.1} parent=31 // pred_region
          %190 = dma.done %s183, 1024
        $region36: #{tpu_custom_call.1} parent=31 // pred_fallthru
          _
        // Predicated region
        $region37: #{tpu_custom_call.1} parent=31 // pred_check
          %p191 = pneg %p64
        $region38: #{tpu_custom_call.1} parent=31 // pred_check_branch
          %193 = sbr.rel (%p191) target = $region40
        $region39: #{tpu_custom_call.1} parent=31 // pred_region
          %194 = dma.done [#allocation8], 3584
        $region40: #{tpu_custom_call.1} parent=31 // pred_fallthru
          _
        // Predicated region
        $region41: #{tpu_custom_call.1} parent=31 // pred_check
          %p195 = pneg %p85
        $region42: #{tpu_custom_call.1} parent=31 // pred_check_branch
          %197 = sbr.rel (%p195) target = $region44
        $region43: #{tpu_custom_call.1} parent=31 // pred_region
          %198 = dma.done [#allocation6], 16
        $region44: #{tpu_custom_call.1} parent=31 // pred_fallthru
          _
        %199 = sfence
        %s200 = sand.u32 %s30, 1
        %s201 = scalar_lea.sflag [#allocation4], %s200
        %s202 = sand.u32 %s30, 1
        %s203 = smul.addr %s202, 64
        %s204 = scalar_lea.vmem [#allocation3], %s203
        %p205 = pneg %p43
        %p206 = pneg %p40
        %p207 = pneg %p64
        %p208 = pneg %p61
        %p209 = pneg %p85
        %p210 = pneg %p82
        %p211 = pneg %p111
        %p212 = pneg %p108
        %s213 = sand.u32 %s98, 1
        %s214 = scalar_lea.sflag [#allocation5], %s213
        %s215 = sand.u32 %s98, 1
        %s216 = smul.addr %s215, 64
        %s217 = scalar_lea.vmem [#allocation10], %s216
        %v218 = vld [vmem:[%s186] sm:$0xff]
        %v219 = vld [vmem:[%s186 + $0x8] sm:$0xff]
        %s220 = scalar_lea.vmem %s186, 16 [#allocation3]
        %v221 = vld [vmem:[%s220] sm:$0xff]
        %v222 = vld [vmem:[%s220 + $0x8] sm:$0xff]
        %v223 = vmax.f32 %v218, %v221
        %v224 = vmax.f32 %v219, %v222
        %v225 = vadd.f32 %v218, %v221
        %v226 = vadd.f32 %v219, %v222
        %s227 = scalar_lea.vmem %s186, 32 [#allocation3]
        %v228 = vld [vmem:[%s227] sm:$0xff]
        %v229 = vld [vmem:[%s227 + $0x8] sm:$0xff]
        %v230 = vmax.f32 %v223, %v228
        %v231 = vmax.f32 %v224, %v229
        %v232 = vadd.f32 %v225, %v228
        %v233 = vadd.f32 %v226, %v229
        %s234 = scalar_lea.vmem %s186, 48 [#allocation3]
        %v235 = vld [vmem:[%s234] sm:$0xff]
        %v236 = vld [vmem:[%s234 + $0x8] sm:$0xff]
        %v237 = vmax.f32 %v230, %v235
        %v238 = vmax.f32 %v231, %v236
        %v239 = vadd.f32 %v232, %v235
        %v240 = vadd.f32 %v233, %v236
        %v241 = vmul.f32 %v239, 0.25
        %v242 = vmul.f32 %v240, 0.25
        %vm243 = vcmask 130048
        %244 = vst.msk [vmem:[#allocation2] sm:$0xff] %vm243, 0.0
        %245 = vst.msk [vmem:[#allocation2 + $0x8] sm:$0xff] %vm243, 0.0
        %vm246 = vcmask 128000
        %247 = vst.msk [vmem:[#allocation2 + $0x10] sm:$0x3f] %vm246, 0.0
        %248 = vst.msk [vmem:[#allocation2 + $0x18] sm:$0xff] %vm243, 0.0
        %249 = vst.msk [vmem:[#allocation2 + $0x20] sm:$0xff] %vm243, 0.0
        %250 = vst.msk [vmem:[#allocation2 + $0x28] sm:$0x3f] %vm246, 0.0
        %251 = vst.msk [vmem:[#allocation2 + $0x3] sm:$0xff] %vm243, %v237
        %252 = vst.msk [vmem:[#allocation2 + $0xb] sm:$0xff] %vm243, %v238
        %s253 = scalar_lea.vmem [#allocation2], 24
        %254 = vst.msk [vmem:[%s253 + $0x3] sm:$0xff] %vm243, %v241
        %255 = vst.msk [vmem:[%s253 + $0xb] sm:$0xff] %vm243, %v242
        %v256 = vld [vmem:[#allocation2] sm:$0xff]
        %v257 = vld [vmem:[#allocation2 + $0x8] sm:$0xff]
        %v258 = vld [vmem:[#allocation7] sm:$0xff]
        %v259 = vld [vmem:[#allocation7 + $0x8] sm:$0xff]
        %v260 = vld [vmem:[#allocation2 + $0x1] sm:$0xff]
        %v261 = vld [vmem:[#allocation2 + $0x9] sm:$0xff]
        %s262 = scalar_lea.vmem [#allocation7], 16
        %v263 = vld [vmem:[%s262] sm:$0xff]
        %v264 = vld [vmem:[%s262 + $0x8] sm:$0xff]
        %v266 = vsel %vm243, %v260, 0
        %v269 = vsel %vm243, %v261, 0
        %271 = vmatprep.subr.mxu0 0.0
        %272 = vmatpush1.msra.mxu0 %v263
        %273 = vmatprep.subr.mxu0 0.0
        %274 = vmatpush1.msra.mxu0 %v264
        %275 = vmatprep.subr.mxu0 0.0
        %276 = vmatpush1.msra.mxu0 0.0
        %277 = vmatprep.subr.mxu0 0.0
        %278 = vmatpush1.msra.mxu0 0.0
        %279 = vmatprep.subr.mxu0 0.0
        %280 = vmatpush1.msra.mxu0 0.0
        %281 = vmatprep.subr.mxu0 0.0
        %282 = vmatpush1.msra.mxu0 0.0
        %283 = vmatprep.subr.mxu0 0.0
        %284 = vmatpush1.msra.mxu0 0.0
        %285 = vmatprep.subr.mxu0 0.0
        %286 = vmatpush1.msra.mxu0 0.0
        %287 = vmatprep.subr.mxu0 0.0
        %288 = vmatpush1.msra.mxu0 0.0
        %289 = vmatprep.subr.mxu0 0.0
        %290 = vmatpush1.msra.mxu0 0.0
        %291 = vmatprep.subr.mxu0 0.0
        %292 = vmatpush1.msra.mxu0 0.0
        %293 = vmatprep.subr.mxu0 0.0
        %294 = vmatpush1.msra.mxu0 0.0
        %295 = vmatprep.subr.mxu0 0.0
        %296 = vmatpush1.msra.mxu0 0.0
        %297 = vmatprep.subr.mxu0 0.0
        %298 = vmatpush1.msra.mxu0 0.0
        %299 = vmatprep.subr.mxu0 0.0
        %300 = vmatpush1.msra.mxu0 0.0
        %301 = vmatprep.subr.mxu0 0.0
        %302 = vmatpush1.msra.mxu0 0.0
        %303 = vmatprep.subr.mxu0 0.0
        %304 = vmatpush1.msra.mxu0 0.0
        %305 = vmatprep.subr.mxu0 0.0
        %306 = vmatpush1.msra.mxu0 0.0
        %307 = vmatprep.subr.mxu0 0.0
        %308 = vmatpush1.msra.mxu0 0.0
        %309 = vmatprep.subr.mxu0 0.0
        %310 = vmatpush1.msra.mxu0 0.0
        %311 = vmatprep.subr.mxu0 0.0
        %312 = vmatpush1.msra.mxu0 0.0
        %313 = vmatprep.subr.mxu0 0.0
        %314 = vmatpush1.msra.mxu0 0.0
        %315 = vmatprep.subr.mxu0 0.0
        %316 = vmatpush1.msra.mxu0 0.0
        %317 = vmatprep.subr.mxu0 0.0
        %318 = vmatpush1.msra.mxu0 0.0
        %319 = vmatprep.subr.mxu0 0.0
        %320 = vmatpush1.msra.mxu0 0.0
        %321 = vmatprep.subr.mxu0 0.0
        %322 = vmatpush1.msra.mxu0 0.0
        %323 = vmatprep.subr.mxu0 0.0
        %324 = vmatpush1.msra.mxu0 0.0
        %325 = vmatprep.subr.mxu0 0.0
        %326 = vmatpush1.msra.mxu0 0.0
        %327 = vmatprep.subr.mxu0 0.0
        %328 = vmatpush1.msra.mxu0 0.0
        %329 = vmatprep.subr.mxu0 0.0
        %330 = vmatpush1.msra.mxu0 0.0
        %331 = vmatprep.subr.mxu0 0.0
        %332 = vmatpush1.msra.mxu0 0.0
        %333 = vmatprep.subr.mxu0 0.0
        %334 = vmatpush1.msra.mxu0 0.0
        %335 = vmatprep.mubr.f32.mxu0 0.0
        %336 = vmatmul.mubr.f32.gmra.mrb[0].mxu0 %v266
        %v337 = vpop.f32.mrb[0].mxu0
        %v338 = vadd.f32 0.0, %v337
        %v339 = vpop.f32.mrb[0].mxu0
        %340 = vmatprep.mubr.f32.mxu0 0.0
        %341 = vmatmul.mubr.f32.gmra.mrb[0].mxu0 %v269
        %v342 = vpop.f32.mrb[0].mxu0
        %v343 = vadd.f32 0.0, %v342
        %v344 = vpop.f32.mrb[0].mxu0
        %345 = vdwg.mxu0
        %v347 = vsel %vm243, %v256, 0
        %v350 = vsel %vm243, %v257, 0
        %352 = vmatprep.subr.mxu0 0.0
        %353 = vmatpush1.msra.mxu0 %v258
        %354 = vmatprep.subr.mxu0 0.0
        %355 = vmatpush1.msra.mxu0 %v259
        %356 = vmatprep.subr.mxu0 0.0
        %357 = vmatpush1.msra.mxu0 0.0
        %358 = vmatprep.subr.mxu0 0.0
        %359 = vmatpush1.msra.mxu0 0.0
        %360 = vmatprep.subr.mxu0 0.0
        %361 = vmatpush1.msra.mxu0 0.0
        %362 = vmatprep.subr.mxu0 0.0
        %363 = vmatpush1.msra.mxu0 0.0
        %364 = vmatprep.subr.mxu0 0.0
        %365 = vmatpush1.msra.mxu0 0.0
        %366 = vmatprep.subr.mxu0 0.0
        %367 = vmatpush1.msra.mxu0 0.0
        %368 = vmatprep.subr.mxu0 0.0
        %369 = vmatpush1.msra.mxu0 0.0
        %370 = vmatprep.subr.mxu0 0.0
        %371 = vmatpush1.msra.mxu0 0.0
        %372 = vmatprep.subr.mxu0 0.0
        %373 = vmatpush1.msra.mxu0 0.0
        %374 = vmatprep.subr.mxu0 0.0
        %375 = vmatpush1.msra.mxu0 0.0
        %376 = vmatprep.subr.mxu0 0.0
        %377 = vmatpush1.msra.mxu0 0.0
        %378 = vmatprep.subr.mxu0 0.0
        %379 = vmatpush1.msra.mxu0 0.0
        %380 = vmatprep.subr.mxu0 0.0
        %381 = vmatpush1.msra.mxu0 0.0
        %382 = vmatprep.subr.mxu0 0.0
        %383 = vmatpush1.msra.mxu0 0.0
        %384 = vmatprep.subr.mxu0 0.0
        %385 = vmatpush1.msra.mxu0 0.0
        %386 = vmatprep.subr.mxu0 0.0
        %387 = vmatpush1.msra.mxu0 0.0
        %388 = vmatprep.subr.mxu0 0.0
        %389 = vmatpush1.msra.mxu0 0.0
        %390 = vmatprep.subr.mxu0 0.0
        %391 = vmatpush1.msra.mxu0 0.0
        %392 = vmatprep.subr.mxu0 0.0
        %393 = vmatpush1.msra.mxu0 0.0
        %394 = vmatprep.subr.mxu0 0.0
        %395 = vmatpush1.msra.mxu0 0.0
        %396 = vmatprep.subr.mxu0 0.0
        %397 = vmatpush1.msra.mxu0 0.0
        %398 = vmatprep.subr.mxu0 0.0
        %399 = vmatpush1.msra.mxu0 0.0
        %400 = vmatprep.subr.mxu0 0.0
        %401 = vmatpush1.msra.mxu0 0.0
        %402 = vmatprep.subr.mxu0 0.0
        %403 = vmatpush1.msra.mxu0 0.0
        %404 = vmatprep.subr.mxu0 0.0
        %405 = vmatpush1.msra.mxu0 0.0
        %406 = vmatprep.subr.mxu0 0.0
        %407 = vmatpush1.msra.mxu0 0.0
        %408 = vmatprep.subr.mxu0 0.0
        %409 = vmatpush1.msra.mxu0 0.0
        %410 = vmatprep.subr.mxu0 0.0
        %411 = vmatpush1.msra.mxu0 0.0
        %412 = vmatprep.subr.mxu0 0.0
        %413 = vmatpush1.msra.mxu0 0.0
        %414 = vmatprep.subr.mxu0 0.0
        %415 = vmatpush1.msra.mxu0 0.0
        %416 = vmatprep.mubr.f32.mxu0 0.0
        %417 = vmatmul.mubr.f32.gmra.mrb[0].mxu0 %v347
        %v418 = vpop.f32.mrb[0].mxu0
        %v419 = vadd.f32 %v338, %v418
        %v420 = vpop.f32.mrb[0].mxu0
        %421 = vmatprep.mubr.f32.mxu0 0.0
        %422 = vmatmul.mubr.f32.gmra.mrb[0].mxu0 %v350
        %v423 = vpop.f32.mrb[0].mxu0
        %v424 = vadd.f32 %v343, %v423
        %v425 = vpop.f32.mrb[0].mxu0
        %426 = vdwg.mxu0
        %v427 = vld [vmem:[#allocation2 + $0x2] sm:$0xff]
        %v428 = vld [vmem:[#allocation2 + $0xa] sm:$0xff]
        %s429 = scalar_lea.vmem [#allocation7], 32
        %v430 = vld [vmem:[%s429] sm:$0xff]
        %v431 = vld [vmem:[%s429 + $0x8] sm:$0xff]
        %v433 = vsel %vm243, %v427, 0
        %v436 = vsel %vm243, %v428, 0
        %438 = vmatprep.subr.mxu0 0.0
        %439 = vmatpush1.msra.mxu0 %v430
        %440 = vmatprep.subr.mxu0 0.0
        %441 = vmatpush1.msra.mxu0 %v431
        %442 = vmatprep.subr.mxu0 0.0
        %443 = vmatpush1.msra.mxu0 0.0
        %444 = vmatprep.subr.mxu0 0.0
        %445 = vmatpush1.msra.mxu0 0.0
        %446 = vmatprep.subr.mxu0 0.0
        %447 = vmatpush1.msra.mxu0 0.0
        %448 = vmatprep.subr.mxu0 0.0
        %449 = vmatpush1.msra.mxu0 0.0
        %450 = vmatprep.subr.mxu0 0.0
        %451 = vmatpush1.msra.mxu0 0.0
        %452 = vmatprep.subr.mxu0 0.0
        %453 = vmatpush1.msra.mxu0 0.0
        %454 = vmatprep.subr.mxu0 0.0
        %455 = vmatpush1.msra.mxu0 0.0
        %456 = vmatprep.subr.mxu0 0.0
        %457 = vmatpush1.msra.mxu0 0.0
        %458 = vmatprep.subr.mxu0 0.0
        %459 = vmatpush1.msra.mxu0 0.0
        %460 = vmatprep.subr.mxu0 0.0
        %461 = vmatpush1.msra.mxu0 0.0
        %462 = vmatprep.subr.mxu0 0.0
        %463 = vmatpush1.msra.mxu0 0.0
        %464 = vmatprep.subr.mxu0 0.0
        %465 = vmatpush1.msra.mxu0 0.0
        %466 = vmatprep.subr.mxu0 0.0
        %467 = vmatpush1.msra.mxu0 0.0
        %468 = vmatprep.subr.mxu0 0.0
        %469 = vmatpush1.msra.mxu0 0.0
        %470 = vmatprep.subr.mxu0 0.0
        %471 = vmatpush1.msra.mxu0 0.0
        %472 = vmatprep.subr.mxu0 0.0
        %473 = vmatpush1.msra.mxu0 0.0
        %474 = vmatprep.subr.mxu0 0.0
        %475 = vmatpush1.msra.mxu0 0.0
        %476 = vmatprep.subr.mxu0 0.0
        %477 = vmatpush1.msra.mxu0 0.0
        %478 = vmatprep.subr.mxu0 0.0
        %479 = vmatpush1.msra.mxu0 0.0
        %480 = vmatprep.subr.mxu0 0.0
        %481 = vmatpush1.msra.mxu0 0.0
        %482 = vmatprep.subr.mxu0 0.0
        %483 = vmatpush1.msra.mxu0 0.0
        %484 = vmatprep.subr.mxu0 0.0
        %485 = vmatpush1.msra.mxu0 0.0
        %486 = vmatprep.subr.mxu0 0.0
        %487 = vmatpush1.msra.mxu0 0.0
        %488 = vmatprep.subr.mxu0 0.0
        %489 = vmatpush1.msra.mxu0 0.0
        %490 = vmatprep.subr.mxu0 0.0
        %491 = vmatpush1.msra.mxu0 0.0
        %492 = vmatprep.subr.mxu0 0.0
        %493 = vmatpush1.msra.mxu0 0.0
        %494 = vmatprep.subr.mxu0 0.0
        %495 = vmatpush1.msra.mxu0 0.0
        %496 = vmatprep.subr.mxu0 0.0
        %497 = vmatpush1.msra.mxu0 0.0
        %498 = vmatprep.subr.mxu0 0.0
        %499 = vmatpush1.msra.mxu0 0.0
        %500 = vmatprep.subr.mxu0 0.0
        %501 = vmatpush1.msra.mxu0 0.0
        %502 = vmatprep.mubr.f32.mxu0 0.0
        %503 = vmatmul.mubr.f32.gmra.mrb[0].mxu0 %v433
        %v504 = vpop.f32.mrb[0].mxu0
        %v505 = vadd.f32 0.0, %v504
        %v506 = vpop.f32.mrb[0].mxu0
        %507 = vmatprep.mubr.f32.mxu0 0.0
        %508 = vmatmul.mubr.f32.gmra.mrb[0].mxu0 %v436
        %v509 = vpop.f32.mrb[0].mxu0
        %v510 = vadd.f32 0.0, %v509
        %v511 = vpop.f32.mrb[0].mxu0
        %512 = vdwg.mxu0
        %v513 = vadd.f32 %v419, %v505
        %v514 = vadd.f32 %v424, %v510
        %v515 = vld [vmem:[#allocation2 + $0x3] sm:$0xff]
        %v516 = vld [vmem:[#allocation2 + $0xb] sm:$0xff]
        %s517 = scalar_lea.vmem [#allocation7], 48
        %v518 = vld [vmem:[%s517] sm:$0xff]
        %v519 = vld [vmem:[%s517 + $0x8] sm:$0xff]
        %v521 = vsel %vm243, %v515, 0
        %v524 = vsel %vm243, %v516, 0
        %526 = vmatprep.subr.mxu0 0.0
        %527 = vmatpush1.msra.mxu0 %v518
        %528 = vmatprep.subr.mxu0 0.0
        %529 = vmatpush1.msra.mxu0 %v519
        %530 = vmatprep.subr.mxu0 0.0
        %531 = vmatpush1.msra.mxu0 0.0
        %532 = vmatprep.subr.mxu0 0.0
        %533 = vmatpush1.msra.mxu0 0.0
        %534 = vmatprep.subr.mxu0 0.0
        %535 = vmatpush1.msra.mxu0 0.0
        %536 = vmatprep.subr.mxu0 0.0
        %537 = vmatpush1.msra.mxu0 0.0
        %538 = vmatprep.subr.mxu0 0.0
        %539 = vmatpush1.msra.mxu0 0.0
        %540 = vmatprep.subr.mxu0 0.0
        %541 = vmatpush1.msra.mxu0 0.0
        %542 = vmatprep.subr.mxu0 0.0
        %543 = vmatpush1.msra.mxu0 0.0
        %544 = vmatprep.subr.mxu0 0.0
        %545 = vmatpush1.msra.mxu0 0.0
        %546 = vmatprep.subr.mxu0 0.0
        %547 = vmatpush1.msra.mxu0 0.0
        %548 = vmatprep.subr.mxu0 0.0
        %549 = vmatpush1.msra.mxu0 0.0
        %550 = vmatprep.subr.mxu0 0.0
        %551 = vmatpush1.msra.mxu0 0.0
        %552 = vmatprep.subr.mxu0 0.0
        %553 = vmatpush1.msra.mxu0 0.0
        %554 = vmatprep.subr.mxu0 0.0
        %555 = vmatpush1.msra.mxu0 0.0
        %556 = vmatprep.subr.mxu0 0.0
        %557 = vmatpush1.msra.mxu0 0.0
        %558 = vmatprep.subr.mxu0 0.0
        %559 = vmatpush1.msra.mxu0 0.0
        %560 = vmatprep.subr.mxu0 0.0
        %561 = vmatpush1.msra.mxu0 0.0
        %562 = vmatprep.subr.mxu0 0.0
        %563 = vmatpush1.msra.mxu0 0.0
        %564 = vmatprep.subr.mxu0 0.0
        %565 = vmatpush1.msra.mxu0 0.0
        %566 = vmatprep.subr.mxu0 0.0
        %567 = vmatpush1.msra.mxu0 0.0
        %568 = vmatprep.subr.mxu0 0.0
        %569 = vmatpush1.msra.mxu0 0.0
        %570 = vmatprep.subr.mxu0 0.0
        %571 = vmatpush1.msra.mxu0 0.0
        %572 = vmatprep.subr.mxu0 0.0
        %573 = vmatpush1.msra.mxu0 0.0
        %574 = vmatprep.subr.mxu0 0.0
        %575 = vmatpush1.msra.mxu0 0.0
        %576 = vmatprep.subr.mxu0 0.0
        %577 = vmatpush1.msra.mxu0 0.0
        %578 = vmatprep.subr.mxu0 0.0
        %579 = vmatpush1.msra.mxu0 0.0
        %580 = vmatprep.subr.mxu0 0.0
        %581 = vmatpush1.msra.mxu0 0.0
        %582 = vmatprep.subr.mxu0 0.0
        %583 = vmatpush1.msra.mxu0 0.0
        %584 = vmatprep.subr.mxu0 0.0
        %585 = vmatpush1.msra.mxu0 0.0
        %586 = vmatprep.subr.mxu0 0.0
        %587 = vmatpush1.msra.mxu0 0.0
        %588 = vmatprep.subr.mxu0 0.0
        %589 = vmatpush1.msra.mxu0 0.0
        %590 = vmatprep.mubr.f32.mxu0 0.0
        %591 = vmatmul.mubr.f32.gmra.mrb[0].mxu0 %v521
        %v592 = vpop.f32.mrb[0].mxu0
        %v593 = vadd.f32 0.0, %v592
        %v594 = vpop.f32.mrb[0].mxu0
        %595 = vmatprep.mubr.f32.mxu0 0.0
        %596 = vmatmul.mubr.f32.gmra.mrb[0].mxu0 %v524
        %v597 = vpop.f32.mrb[0].mxu0
        %v598 = vadd.f32 0.0, %v597
        %v599 = vpop.f32.mrb[0].mxu0
        %600 = vdwg.mxu0
        %v601 = vadd.f32 %v513, %v593
        %v602 = vadd.f32 %v514, %v598
        %v603 = vld [vmem:[#allocation2 + $0x4] sm:$0xff]
        %v604 = vld [vmem:[#allocation2 + $0xc] sm:$0xff]
        %s605 = scalar_lea.vmem [#allocation7], 64
        %v606 = vld [vmem:[%s605] sm:$0xff]
        %v607 = vld [vmem:[%s605 + $0x8] sm:$0xff]
        %v609 = vsel %vm243, %v603, 0
        %v612 = vsel %vm243, %v604, 0
        %614 = vmatprep.subr.mxu0 0.0
        %615 = vmatpush1.msra.mxu0 %v606
        %616 = vmatprep.subr.mxu0 0.0
        %617 = vmatpush1.msra.mxu0 %v607
        %618 = vmatprep.subr.mxu0 0.0
        %619 = vmatpush1.msra.mxu0 0.0
        %620 = vmatprep.subr.mxu0 0.0
        %621 = vmatpush1.msra.mxu0 0.0
        %622 = vmatprep.subr.mxu0 0.0
        %623 = vmatpush1.msra.mxu0 0.0
        %624 = vmatprep.subr.mxu0 0.0
        %625 = vmatpush1.msra.mxu0 0.0
        %626 = vmatprep.subr.mxu0 0.0
        %627 = vmatpush1.msra.mxu0 0.0
        %628 = vmatprep.subr.mxu0 0.0
        %629 = vmatpush1.msra.mxu0 0.0
        %630 = vmatprep.subr.mxu0 0.0
        %631 = vmatpush1.msra.mxu0 0.0
        %632 = vmatprep.subr.mxu0 0.0
        %633 = vmatpush1.msra.mxu0 0.0
        %634 = vmatprep.subr.mxu0 0.0
        %635 = vmatpush1.msra.mxu0 0.0
        %636 = vmatprep.subr.mxu0 0.0
        %637 = vmatpush1.msra.mxu0 0.0
        %638 = vmatprep.subr.mxu0 0.0
        %639 = vmatpush1.msra.mxu0 0.0
        %640 = vmatprep.subr.mxu0 0.0
        %641 = vmatpush1.msra.mxu0 0.0
        %642 = vmatprep.subr.mxu0 0.0
        %643 = vmatpush1.msra.mxu0 0.0
        %644 = vmatprep.subr.mxu0 0.0
        %645 = vmatpush1.msra.mxu0 0.0
        %646 = vmatprep.subr.mxu0 0.0
        %647 = vmatpush1.msra.mxu0 0.0
        %648 = vmatprep.subr.mxu0 0.0
        %649 = vmatpush1.msra.mxu0 0.0
        %650 = vmatprep.subr.mxu0 0.0
        %651 = vmatpush1.msra.mxu0 0.0
        %652 = vmatprep.subr.mxu0 0.0
        %653 = vmatpush1.msra.mxu0 0.0
        %654 = vmatprep.subr.mxu0 0.0
        %655 = vmatpush1.msra.mxu0 0.0
        %656 = vmatprep.subr.mxu0 0.0
        %657 = vmatpush1.msra.mxu0 0.0
        %658 = vmatprep.subr.mxu0 0.0
        %659 = vmatpush1.msra.mxu0 0.0
        %660 = vmatprep.subr.mxu0 0.0
        %661 = vmatpush1.msra.mxu0 0.0
        %662 = vmatprep.subr.mxu0 0.0
        %663 = vmatpush1.msra.mxu0 0.0
        %664 = vmatprep.subr.mxu0 0.0
        %665 = vmatpush1.msra.mxu0 0.0
        %666 = vmatprep.subr.mxu0 0.0
        %667 = vmatpush1.msra.mxu0 0.0
        %668 = vmatprep.subr.mxu0 0.0
        %669 = vmatpush1.msra.mxu0 0.0
        %670 = vmatprep.subr.mxu0 0.0
        %671 = vmatpush1.msra.mxu0 0.0
        %672 = vmatprep.subr.mxu0 0.0
        %673 = vmatpush1.msra.mxu0 0.0
        %674 = vmatprep.subr.mxu0 0.0
        %675 = vmatpush1.msra.mxu0 0.0
        %676 = vmatprep.subr.mxu0 0.0
        %677 = vmatpush1.msra.mxu0 0.0
        %678 = vmatprep.mubr.f32.mxu0 0.0
        %679 = vmatmul.mubr.f32.gmra.mrb[0].mxu0 %v609
        %v680 = vpop.f32.mrb[0].mxu0
        %v681 = vadd.f32 0.0, %v680
        %v682 = vpop.f32.mrb[0].mxu0
        %683 = vmatprep.mubr.f32.mxu0 0.0
        %684 = vmatmul.mubr.f32.gmra.mrb[0].mxu0 %v612
        %v685 = vpop.f32.mrb[0].mxu0
        %v686 = vadd.f32 0.0, %v685
        %v687 = vpop.f32.mrb[0].mxu0
        %688 = vdwg.mxu0
        %v689 = vadd.f32 %v601, %v681
        %v690 = vadd.f32 %v602, %v686
        %v691 = vld [vmem:[#allocation2 + $0x5] sm:$0xff]
        %v692 = vld [vmem:[#allocation2 + $0xd] sm:$0xff]
        %s693 = scalar_lea.vmem [#allocation7], 80
        %v694 = vld [vmem:[%s693] sm:$0xff]
        %v695 = vld [vmem:[%s693 + $0x8] sm:$0xff]
        %v697 = vsel %vm243, %v691, 0
        %v700 = vsel %vm243, %v692, 0
        %702 = vmatprep.subr.mxu0 0.0
        %703 = vmatpush1.msra.mxu0 %v694
        %704 = vmatprep.subr.mxu0 0.0
        %705 = vmatpush1.msra.mxu0 %v695
        %706 = vmatprep.subr.mxu0 0.0
        %707 = vmatpush1.msra.mxu0 0.0
        %708 = vmatprep.subr.mxu0 0.0
        %709 = vmatpush1.msra.mxu0 0.0
        %710 = vmatprep.subr.mxu0 0.0
        %711 = vmatpush1.msra.mxu0 0.0
        %712 = vmatprep.subr.mxu0 0.0
        %713 = vmatpush1.msra.mxu0 0.0
        %714 = vmatprep.subr.mxu0 0.0
        %715 = vmatpush1.msra.mxu0 0.0
        %716 = vmatprep.subr.mxu0 0.0
        %717 = vmatpush1.msra.mxu0 0.0
        %718 = vmatprep.subr.mxu0 0.0
        %719 = vmatpush1.msra.mxu0 0.0
        %720 = vmatprep.subr.mxu0 0.0
        %721 = vmatpush1.msra.mxu0 0.0
        %722 = vmatprep.subr.mxu0 0.0
        %723 = vmatpush1.msra.mxu0 0.0
        %724 = vmatprep.subr.mxu0 0.0
        %725 = vmatpush1.msra.mxu0 0.0
        %726 = vmatprep.subr.mxu0 0.0
        %727 = vmatpush1.msra.mxu0 0.0
        %728 = vmatprep.subr.mxu0 0.0
        %729 = vmatpush1.msra.mxu0 0.0
        %730 = vmatprep.subr.mxu0 0.0
        %731 = vmatpush1.msra.mxu0 0.0
        %732 = vmatprep.subr.mxu0 0.0
        %733 = vmatpush1.msra.mxu0 0.0
        %734 = vmatprep.subr.mxu0 0.0
        %735 = vmatpush1.msra.mxu0 0.0
        %736 = vmatprep.subr.mxu0 0.0
        %737 = vmatpush1.msra.mxu0 0.0
        %738 = vmatprep.subr.mxu0 0.0
        %739 = vmatpush1.msra.mxu0 0.0
        %740 = vmatprep.subr.mxu0 0.0
        %741 = vmatpush1.msra.mxu0 0.0
        %742 = vmatprep.subr.mxu0 0.0
        %743 = vmatpush1.msra.mxu0 0.0
        %744 = vmatprep.subr.mxu0 0.0
        %745 = vmatpush1.msra.mxu0 0.0
        %746 = vmatprep.subr.mxu0 0.0
        %747 = vmatpush1.msra.mxu0 0.0
        %748 = vmatprep.subr.mxu0 0.0
        %749 = vmatpush1.msra.mxu0 0.0
        %750 = vmatprep.subr.mxu0 0.0
        %751 = vmatpush1.msra.mxu0 0.0
        %752 = vmatprep.subr.mxu0 0.0
        %753 = vmatpush1.msra.mxu0 0.0
        %754 = vmatprep.subr.mxu0 0.0
        %755 = vmatpush1.msra.mxu0 0.0
        %756 = vmatprep.subr.mxu0 0.0
        %757 = vmatpush1.msra.mxu0 0.0
        %758 = vmatprep.subr.mxu0 0.0
        %759 = vmatpush1.msra.mxu0 0.0
        %760 = vmatprep.subr.mxu0 0.0
        %761 = vmatpush1.msra.mxu0 0.0
        %762 = vmatprep.subr.mxu0 0.0
        %763 = vmatpush1.msra.mxu0 0.0
        %764 = vmatprep.subr.mxu0 0.0
        %765 = vmatpush1.msra.mxu0 0.0
        %766 = vmatprep.mubr.f32.mxu0 0.0
        %767 = vmatmul.mubr.f32.gmra.mrb[0].mxu0 %v697
        %v768 = vpop.f32.mrb[0].mxu0
        %v769 = vadd.f32 0.0, %v768
        %v770 = vpop.f32.mrb[0].mxu0
        %771 = vmatprep.mubr.f32.mxu0 0.0
        %772 = vmatmul.mubr.f32.gmra.mrb[0].mxu0 %v700
        %v773 = vpop.f32.mrb[0].mxu0
        %v774 = vadd.f32 0.0, %v773
        %v775 = vpop.f32.mrb[0].mxu0
        %776 = vdwg.mxu0
        %v777 = vadd.f32 %v689, %v769
        %v778 = vadd.f32 %v690, %v774
        %v779 = vld [vmem:[#allocation2 + $0x6] sm:$0xff]
        %v780 = vld [vmem:[#allocation2 + $0xe] sm:$0xff]
        %s781 = scalar_lea.vmem [#allocation7], 96
        %v782 = vld [vmem:[%s781] sm:$0xff]
        %v783 = vld [vmem:[%s781 + $0x8] sm:$0xff]
        %v785 = vsel %vm243, %v779, 0
        %v788 = vsel %vm243, %v780, 0
        %790 = vmatprep.subr.mxu0 0.0
        %791 = vmatpush1.msra.mxu0 %v782
        %792 = vmatprep.subr.mxu0 0.0
        %793 = vmatpush1.msra.mxu0 %v783
        %794 = vmatprep.subr.mxu0 0.0
        %795 = vmatpush1.msra.mxu0 0.0
        %796 = vmatprep.subr.mxu0 0.0
        %797 = vmatpush1.msra.mxu0 0.0
        %798 = vmatprep.subr.mxu0 0.0
        %799 = vmatpush1.msra.mxu0 0.0
        %800 = vmatprep.subr.mxu0 0.0
        %801 = vmatpush1.msra.mxu0 0.0
        %802 = vmatprep.subr.mxu0 0.0
        %803 = vmatpush1.msra.mxu0 0.0
        %804 = vmatprep.subr.mxu0 0.0
        %805 = vmatpush1.msra.mxu0 0.0
        %806 = vmatprep.subr.mxu0 0.0
        %807 = vmatpush1.msra.mxu0 0.0
        %808 = vmatprep.subr.mxu0 0.0
        %809 = vmatpush1.msra.mxu0 0.0
        %810 = vmatprep.subr.mxu0 0.0
        %811 = vmatpush1.msra.mxu0 0.0
        %812 = vmatprep.subr.mxu0 0.0
        %813 = vmatpush1.msra.mxu0 0.0
        %814 = vmatprep.subr.mxu0 0.0
        %815 = vmatpush1.msra.mxu0 0.0
        %816 = vmatprep.subr.mxu0 0.0
        %817 = vmatpush1.msra.mxu0 0.0
        %818 = vmatprep.subr.mxu0 0.0
        %819 = vmatpush1.msra.mxu0 0.0
        %820 = vmatprep.subr.mxu0 0.0
        %821 = vmatpush1.msra.mxu0 0.0
        %822 = vmatprep.subr.mxu0 0.0
        %823 = vmatpush1.msra.mxu0 0.0
        %824 = vmatprep.subr.mxu0 0.0
        %825 = vmatpush1.msra.mxu0 0.0
        %826 = vmatprep.subr.mxu0 0.0
        %827 = vmatpush1.msra.mxu0 0.0
        %828 = vmatprep.subr.mxu0 0.0
        %829 = vmatpush1.msra.mxu0 0.0
        %830 = vmatprep.subr.mxu0 0.0
        %831 = vmatpush1.msra.mxu0 0.0
        %832 = vmatprep.subr.mxu0 0.0
        %833 = vmatpush1.msra.mxu0 0.0
        %834 = vmatprep.subr.mxu0 0.0
        %835 = vmatpush1.msra.mxu0 0.0
        %836 = vmatprep.subr.mxu0 0.0
        %837 = vmatpush1.msra.mxu0 0.0
        %838 = vmatprep.subr.mxu0 0.0
        %839 = vmatpush1.msra.mxu0 0.0
        %840 = vmatprep.subr.mxu0 0.0
        %841 = vmatpush1.msra.mxu0 0.0
        %842 = vmatprep.subr.mxu0 0.0
        %843 = vmatpush1.msra.mxu0 0.0
        %844 = vmatprep.subr.mxu0 0.0
        %845 = vmatpush1.msra.mxu0 0.0
        %846 = vmatprep.subr.mxu0 0.0
        %847 = vmatpush1.msra.mxu0 0.0
        %848 = vmatprep.subr.mxu0 0.0
        %849 = vmatpush1.msra.mxu0 0.0
        %850 = vmatprep.subr.mxu0 0.0
        %851 = vmatpush1.msra.mxu0 0.0
        %852 = vmatprep.subr.mxu0 0.0
        %853 = vmatpush1.msra.mxu0 0.0
        %854 = vmatprep.mubr.f32.mxu0 0.0
        %855 = vmatmul.mubr.f32.gmra.mrb[0].mxu0 %v785
        %v856 = vpop.f32.mrb[0].mxu0
        %v857 = vadd.f32 0.0, %v856
        %v858 = vpop.f32.mrb[0].mxu0
        %859 = vmatprep.mubr.f32.mxu0 0.0
        %860 = vmatmul.mubr.f32.gmra.mrb[0].mxu0 %v788
        %v861 = vpop.f32.mrb[0].mxu0
        %v862 = vadd.f32 0.0, %v861
        %v863 = vpop.f32.mrb[0].mxu0
        %864 = vdwg.mxu0
        %v865 = vadd.f32 %v777, %v857
        %v866 = vadd.f32 %v778, %v862
        %v867 = vld [vmem:[%s253] sm:$0xff]
        %v868 = vld [vmem:[%s253 + $0x8] sm:$0xff]
        %s869 = scalar_lea.vmem [#allocation7], 112
        %v870 = vld [vmem:[%s869] sm:$0xff]
        %v871 = vld [vmem:[%s869 + $0x8] sm:$0xff]
        %v873 = vsel %vm243, %v867, 0
        %v876 = vsel %vm243, %v868, 0
        %878 = vmatprep.subr.mxu0 0.0
        %879 = vmatpush1.msra.mxu0 %v870
        %880 = vmatprep.subr.mxu0 0.0
        %881 = vmatpush1.msra.mxu0 %v871
        %882 = vmatprep.subr.mxu0 0.0
        %883 = vmatpush1.msra.mxu0 0.0
        %884 = vmatprep.subr.mxu0 0.0
        %885 = vmatpush1.msra.mxu0 0.0
        %886 = vmatprep.subr.mxu0 0.0
        %887 = vmatpush1.msra.mxu0 0.0
        %888 = vmatprep.subr.mxu0 0.0
        %889 = vmatpush1.msra.mxu0 0.0
        %890 = vmatprep.subr.mxu0 0.0
        %891 = vmatpush1.msra.mxu0 0.0
        %892 = vmatprep.subr.mxu0 0.0
        %893 = vmatpush1.msra.mxu0 0.0
        %894 = vmatprep.subr.mxu0 0.0
        %895 = vmatpush1.msra.mxu0 0.0
        %896 = vmatprep.subr.mxu0 0.0
        %897 = vmatpush1.msra.mxu0 0.0
        %898 = vmatprep.subr.mxu0 0.0
        %899 = vmatpush1.msra.mxu0 0.0
        %900 = vmatprep.subr.mxu0 0.0
        %901 = vmatpush1.msra.mxu0 0.0
        %902 = vmatprep.subr.mxu0 0.0
        %903 = vmatpush1.msra.mxu0 0.0
        %904 = vmatprep.subr.mxu0 0.0
        %905 = vmatpush1.msra.mxu0 0.0
        %906 = vmatprep.subr.mxu0 0.0
        %907 = vmatpush1.msra.mxu0 0.0
        %908 = vmatprep.subr.mxu0 0.0
        %909 = vmatpush1.msra.mxu0 0.0
        %910 = vmatprep.subr.mxu0 0.0
        %911 = vmatpush1.msra.mxu0 0.0
        %912 = vmatprep.subr.mxu0 0.0
        %913 = vmatpush1.msra.mxu0 0.0
        %914 = vmatprep.subr.mxu0 0.0
        %915 = vmatpush1.msra.mxu0 0.0
        %916 = vmatprep.subr.mxu0 0.0
        %917 = vmatpush1.msra.mxu0 0.0
        %918 = vmatprep.subr.mxu0 0.0
        %919 = vmatpush1.msra.mxu0 0.0
        %920 = vmatprep.subr.mxu0 0.0
        %921 = vmatpush1.msra.mxu0 0.0
        %922 = vmatprep.subr.mxu0 0.0
        %923 = vmatpush1.msra.mxu0 0.0
        %924 = vmatprep.subr.mxu0 0.0
        %925 = vmatpush1.msra.mxu0 0.0
        %926 = vmatprep.subr.mxu0 0.0
        %927 = vmatpush1.msra.mxu0 0.0
        %928 = vmatprep.subr.mxu0 0.0
        %929 = vmatpush1.msra.mxu0 0.0
        %930 = vmatprep.subr.mxu0 0.0
        %931 = vmatpush1.msra.mxu0 0.0
        %932 = vmatprep.subr.mxu0 0.0
        %933 = vmatpush1.msra.mxu0 0.0
        %934 = vmatprep.subr.mxu0 0.0
        %935 = vmatpush1.msra.mxu0 0.0
        %936 = vmatprep.subr.mxu0 0.0
        %937 = vmatpush1.msra.mxu0 0.0
        %938 = vmatprep.subr.mxu0 0.0
        %939 = vmatpush1.msra.mxu0 0.0
        %940 = vmatprep.subr.mxu0 0.0
        %941 = vmatpush1.msra.mxu0 0.0
        %942 = vmatprep.mubr.f32.mxu0 0.0
        %943 = vmatmul.mubr.f32.gmra.mrb[0].mxu0 %v873
        %v944 = vpop.f32.mrb[0].mxu0
        %v945 = vadd.f32 0.0, %v944
        %v946 = vpop.f32.mrb[0].mxu0
        %947 = vmatprep.mubr.f32.mxu0 0.0
        %948 = vmatmul.mubr.f32.gmra.mrb[0].mxu0 %v876
        %v949 = vpop.f32.mrb[0].mxu0
        %v950 = vadd.f32 0.0, %v949
        %v951 = vpop.f32.mrb[0].mxu0
        %952 = vdwg.mxu0
        %v953 = vadd.f32 %v865, %v945
        %v954 = vadd.f32 %v866, %v950
        %v955 = vld [vmem:[%s253 + $0x1] sm:$0xff]
        %v956 = vld [vmem:[%s253 + $0x9] sm:$0xff]
        %s957 = scalar_lea.vmem [#allocation7], 128
        %v958 = vld [vmem:[%s957] sm:$0xff]
        %v959 = vld [vmem:[%s957 + $0x8] sm:$0xff]
        %v961 = vsel %vm243, %v955, 0
        %v964 = vsel %vm243, %v956, 0
        %966 = vmatprep.subr.mxu0 0.0
        %967 = vmatpush1.msra.mxu0 %v958
        %968 = vmatprep.subr.mxu0 0.0
        %969 = vmatpush1.msra.mxu0 %v959
        %970 = vmatprep.subr.mxu0 0.0
        %971 = vmatpush1.msra.mxu0 0.0
        %972 = vmatprep.subr.mxu0 0.0
        %973 = vmatpush1.msra.mxu0 0.0
        %974 = vmatprep.subr.mxu0 0.0
        %975 = vmatpush1.msra.mxu0 0.0
        %976 = vmatprep.subr.mxu0 0.0
        %977 = vmatpush1.msra.mxu0 0.0
        %978 = vmatprep.subr.mxu0 0.0
        %979 = vmatpush1.msra.mxu0 0.0
        %980 = vmatprep.subr.mxu0 0.0
        %981 = vmatpush1.msra.mxu0 0.0
        %982 = vmatprep.subr.mxu0 0.0
        %983 = vmatpush1.msra.mxu0 0.0
        %984 = vmatprep.subr.mxu0 0.0
        %985 = vmatpush1.msra.mxu0 0.0
        %986 = vmatprep.subr.mxu0 0.0
        %987 = vmatpush1.msra.mxu0 0.0
        %988 = vmatprep.subr.mxu0 0.0
        %989 = vmatpush1.msra.mxu0 0.0
        %990 = vmatprep.subr.mxu0 0.0
        %991 = vmatpush1.msra.mxu0 0.0
        %992 = vmatprep.subr.mxu0 0.0
        %993 = vmatpush1.msra.mxu0 0.0
        %994 = vmatprep.subr.mxu0 0.0
        %995 = vmatpush1.msra.mxu0 0.0
        %996 = vmatprep.subr.mxu0 0.0
        %997 = vmatpush1.msra.mxu0 0.0
        %998 = vmatprep.subr.mxu0 0.0
        %999 = vmatpush1.msra.mxu0 0.0
        %1000 = vmatprep.subr.mxu0 0.0
        %1001 = vmatpush1.msra.mxu0 0.0
        %1002 = vmatprep.subr.mxu0 0.0
        %1003 = vmatpush1.msra.mxu0 0.0
        %1004 = vmatprep.subr.mxu0 0.0
        %1005 = vmatpush1.msra.mxu0 0.0
        %1006 = vmatprep.subr.mxu0 0.0
        %1007 = vmatpush1.msra.mxu0 0.0
        %1008 = vmatprep.subr.mxu0 0.0
        %1009 = vmatpush1.msra.mxu0 0.0
        %1010 = vmatprep.subr.mxu0 0.0
        %1011 = vmatpush1.msra.mxu0 0.0
        %1012 = vmatprep.subr.mxu0 0.0
        %1013 = vmatpush1.msra.mxu0 0.0
        %1014 = vmatprep.subr.mxu0 0.0
        %1015 = vmatpush1.msra.mxu0 0.0
        %1016 = vmatprep.subr.mxu0 0.0
        %1017 = vmatpush1.msra.mxu0 0.0
        %1018 = vmatprep.subr.mxu0 0.0
        %1019 = vmatpush1.msra.mxu0 0.0
        %1020 = vmatprep.subr.mxu0 0.0
        %1021 = vmatpush1.msra.mxu0 0.0
        %1022 = vmatprep.subr.mxu0 0.0
        %1023 = vmatpush1.msra.mxu0 0.0
        %1024 = vmatprep.subr.mxu0 0.0
        %1025 = vmatpush1.msra.mxu0 0.0
        %1026 = vmatprep.subr.mxu0 0.0
        %1027 = vmatpush1.msra.mxu0 0.0
        %1028 = vmatprep.subr.mxu0 0.0
        %1029 = vmatpush1.msra.mxu0 0.0
        %1030 = vmatprep.mubr.f32.mxu0 0.0
        %1031 = vmatmul.mubr.f32.gmra.mrb[0].mxu0 %v961
        %v1032 = vpop.f32.mrb[0].mxu0
        %v1033 = vadd.f32 0.0, %v1032
        %v1034 = vpop.f32.mrb[0].mxu0
        %1035 = vmatprep.mubr.f32.mxu0 0.0
        %1036 = vmatmul.mubr.f32.gmra.mrb[0].mxu0 %v964
        %v1037 = vpop.f32.mrb[0].mxu0
        %v1038 = vadd.f32 0.0, %v1037
        %v1039 = vpop.f32.mrb[0].mxu0
        %1040 = vdwg.mxu0
        %v1041 = vadd.f32 %v953, %v1033
        %v1042 = vadd.f32 %v954, %v1038
        %v1043 = vld [vmem:[%s253 + $0x2] sm:$0xff]
        %v1044 = vld [vmem:[%s253 + $0xa] sm:$0xff]
        %s1045 = scalar_lea.vmem [#allocation7], 144
        %v1046 = vld [vmem:[%s1045] sm:$0xff]
        %v1047 = vld [vmem:[%s1045 + $0x8] sm:$0xff]
        %v1049 = vsel %vm243, %v1043, 0
        %v1052 = vsel %vm243, %v1044, 0
        %1054 = vmatprep.subr.mxu0 0.0
        %1055 = vmatpush1.msra.mxu0 %v1046
        %1056 = vmatprep.subr.mxu0 0.0
        %1057 = vmatpush1.msra.mxu0 %v1047
        %1058 = vmatprep.subr.mxu0 0.0
        %1059 = vmatpush1.msra.mxu0 0.0
        %1060 = vmatprep.subr.mxu0 0.0
        %1061 = vmatpush1.msra.mxu0 0.0
        %1062 = vmatprep.subr.mxu0 0.0
        %1063 = vmatpush1.msra.mxu0 0.0
        %1064 = vmatprep.subr.mxu0 0.0
        %1065 = vmatpush1.msra.mxu0 0.0
        %1066 = vmatprep.subr.mxu0 0.0
        %1067 = vmatpush1.msra.mxu0 0.0
        %1068 = vmatprep.subr.mxu0 0.0
        %1069 = vmatpush1.msra.mxu0 0.0
        %1070 = vmatprep.subr.mxu0 0.0
        %1071 = vmatpush1.msra.mxu0 0.0
        %1072 = vmatprep.subr.mxu0 0.0
        %1073 = vmatpush1.msra.mxu0 0.0
        %1074 = vmatprep.subr.mxu0 0.0
        %1075 = vmatpush1.msra.mxu0 0.0
        %1076 = vmatprep.subr.mxu0 0.0
        %1077 = vmatpush1.msra.mxu0 0.0
        %1078 = vmatprep.subr.mxu0 0.0
        %1079 = vmatpush1.msra.mxu0 0.0
        %1080 = vmatprep.subr.mxu0 0.0
        %1081 = vmatpush1.msra.mxu0 0.0
        %1082 = vmatprep.subr.mxu0 0.0
        %1083 = vmatpush1.msra.mxu0 0.0
        %1084 = vmatprep.subr.mxu0 0.0
        %1085 = vmatpush1.msra.mxu0 0.0
        %1086 = vmatprep.subr.mxu0 0.0
        %1087 = vmatpush1.msra.mxu0 0.0
        %1088 = vmatprep.subr.mxu0 0.0
        %1089 = vmatpush1.msra.mxu0 0.0
        %1090 = vmatprep.subr.mxu0 0.0
        %1091 = vmatpush1.msra.mxu0 0.0
        %1092 = vmatprep.subr.mxu0 0.0
        %1093 = vmatpush1.msra.mxu0 0.0
        %1094 = vmatprep.subr.mxu0 0.0
        %1095 = vmatpush1.msra.mxu0 0.0
        %1096 = vmatprep.subr.mxu0 0.0
        %1097 = vmatpush1.msra.mxu0 0.0
        %1098 = vmatprep.subr.mxu0 0.0
        %1099 = vmatpush1.msra.mxu0 0.0
        %1100 = vmatprep.subr.mxu0 0.0
        %1101 = vmatpush1.msra.mxu0 0.0
        %1102 = vmatprep.subr.mxu0 0.0
        %1103 = vmatpush1.msra.mxu0 0.0
        %1104 = vmatprep.subr.mxu0 0.0
        %1105 = vmatpush1.msra.mxu0 0.0
        %1106 = vmatprep.subr.mxu0 0.0
        %1107 = vmatpush1.msra.mxu0 0.0
        %1108 = vmatprep.subr.mxu0 0.0
        %1109 = vmatpush1.msra.mxu0 0.0
        %1110 = vmatprep.subr.mxu0 0.0
        %1111 = vmatpush1.msra.mxu0 0.0
        %1112 = vmatprep.subr.mxu0 0.0
        %1113 = vmatpush1.msra.mxu0 0.0
        %1114 = vmatprep.subr.mxu0 0.0
        %1115 = vmatpush1.msra.mxu0 0.0
        %1116 = vmatprep.subr.mxu0 0.0
        %1117 = vmatpush1.msra.mxu0 0.0
        %1118 = vmatprep.mubr.f32.mxu0 0.0
        %1119 = vmatmul.mubr.f32.gmra.mrb[0].mxu0 %v1049
        %v1120 = vpop.f32.mrb[0].mxu0
        %v1121 = vadd.f32 0.0, %v1120
        %v1122 = vpop.f32.mrb[0].mxu0
        %1123 = vmatprep.mubr.f32.mxu0 0.0
        %1124 = vmatmul.mubr.f32.gmra.mrb[0].mxu0 %v1052
        %v1125 = vpop.f32.mrb[0].mxu0
        %v1126 = vadd.f32 0.0, %v1125
        %v1127 = vpop.f32.mrb[0].mxu0
        %1128 = vdwg.mxu0
        %v1129 = vadd.f32 %v1041, %v1121
        %v1130 = vadd.f32 %v1042, %v1126
        %v1131 = vld [vmem:[%s253 + $0x3] sm:$0xff]
        %v1132 = vld [vmem:[%s253 + $0xb] sm:$0xff]
        %s1133 = scalar_lea.vmem [#allocation7], 160
        %v1134 = vld [vmem:[%s1133] sm:$0xff]
        %v1135 = vld [vmem:[%s1133 + $0x8] sm:$0xff]
        %v1137 = vsel %vm243, %v1131, 0
        %v1140 = vsel %vm243, %v1132, 0
        %1142 = vmatprep.subr.mxu0 0.0
        %1143 = vmatpush1.msra.mxu0 %v1134
        %1144 = vmatprep.subr.mxu0 0.0
        %1145 = vmatpush1.msra.mxu0 %v1135
        %1146 = vmatprep.subr.mxu0 0.0
        %1147 = vmatpush1.msra.mxu0 0.0
        %1148 = vmatprep.subr.mxu0 0.0
        %1149 = vmatpush1.msra.mxu0 0.0
        %1150 = vmatprep.subr.mxu0 0.0
        %1151 = vmatpush1.msra.mxu0 0.0
        %1152 = vmatprep.subr.mxu0 0.0
        %1153 = vmatpush1.msra.mxu0 0.0
        %1154 = vmatprep.subr.mxu0 0.0
        %1155 = vmatpush1.msra.mxu0 0.0
        %1156 = vmatprep.subr.mxu0 0.0
        %1157 = vmatpush1.msra.mxu0 0.0
        %1158 = vmatprep.subr.mxu0 0.0
        %1159 = vmatpush1.msra.mxu0 0.0
        %1160 = vmatprep.subr.mxu0 0.0
        %1161 = vmatpush1.msra.mxu0 0.0
        %1162 = vmatprep.subr.mxu0 0.0
        %1163 = vmatpush1.msra.mxu0 0.0
        %1164 = vmatprep.subr.mxu0 0.0
        %1165 = vmatpush1.msra.mxu0 0.0
        %1166 = vmatprep.subr.mxu0 0.0
        %1167 = vmatpush1.msra.mxu0 0.0
        %1168 = vmatprep.subr.mxu0 0.0
        %1169 = vmatpush1.msra.mxu0 0.0
        %1170 = vmatprep.subr.mxu0 0.0
        %1171 = vmatpush1.msra.mxu0 0.0
        %1172 = vmatprep.subr.mxu0 0.0
        %1173 = vmatpush1.msra.mxu0 0.0
        %1174 = vmatprep.subr.mxu0 0.0
        %1175 = vmatpush1.msra.mxu0 0.0
        %1176 = vmatprep.subr.mxu0 0.0
        %1177 = vmatpush1.msra.mxu0 0.0
        %1178 = vmatprep.subr.mxu0 0.0
        %1179 = vmatpush1.msra.mxu0 0.0
        %1180 = vmatprep.subr.mxu0 0.0
        %1181 = vmatpush1.msra.mxu0 0.0
        %1182 = vmatprep.subr.mxu0 0.0
        %1183 = vmatpush1.msra.mxu0 0.0
        %1184 = vmatprep.subr.mxu0 0.0
        %1185 = vmatpush1.msra.mxu0 0.0
        %1186 = vmatprep.subr.mxu0 0.0
        %1187 = vmatpush1.msra.mxu0 0.0
        %1188 = vmatprep.subr.mxu0 0.0
        %1189 = vmatpush1.msra.mxu0 0.0
        %1190 = vmatprep.subr.mxu0 0.0
        %1191 = vmatpush1.msra.mxu0 0.0
        %1192 = vmatprep.subr.mxu0 0.0
        %1193 = vmatpush1.msra.mxu0 0.0
        %1194 = vmatprep.subr.mxu0 0.0
        %1195 = vmatpush1.msra.mxu0 0.0
        %1196 = vmatprep.subr.mxu0 0.0
        %1197 = vmatpush1.msra.mxu0 0.0
        %1198 = vmatprep.subr.mxu0 0.0
        %1199 = vmatpush1.msra.mxu0 0.0
        %1200 = vmatprep.subr.mxu0 0.0
        %1201 = vmatpush1.msra.mxu0 0.0
        %1202 = vmatprep.subr.mxu0 0.0
        %1203 = vmatpush1.msra.mxu0 0.0
        %1204 = vmatprep.subr.mxu0 0.0
        %1205 = vmatpush1.msra.mxu0 0.0
        %1206 = vmatprep.mubr.f32.mxu0 0.0
        %1207 = vmatmul.mubr.f32.gmra.mrb[0].mxu0 %v1137
        %v1208 = vpop.f32.mrb[0].mxu0
        %v1209 = vadd.f32 0.0, %v1208
        %v1210 = vpop.f32.mrb[0].mxu0
        %1211 = vmatprep.mubr.f32.mxu0 0.0
        %1212 = vmatmul.mubr.f32.gmra.mrb[0].mxu0 %v1140
        %v1213 = vpop.f32.mrb[0].mxu0
        %v1214 = vadd.f32 0.0, %v1213
        %v1215 = vpop.f32.mrb[0].mxu0
        %1216 = vdwg.mxu0
        %v1217 = vadd.f32 %v1129, %v1209
        %v1218 = vadd.f32 %v1130, %v1214
        %v1219 = vld [vmem:[%s253 + $0x4] sm:$0xff]
        %v1220 = vld [vmem:[%s253 + $0xc] sm:$0xff]
        %s1221 = scalar_lea.vmem [#allocation7], 176
        %v1222 = vld [vmem:[%s1221] sm:$0xff]
        %v1223 = vld [vmem:[%s1221 + $0x8] sm:$0xff]
        %v1225 = vsel %vm243, %v1219, 0
        %v1228 = vsel %vm243, %v1220, 0
        %1230 = vmatprep.subr.mxu0 0.0
        %1231 = vmatpush1.msra.mxu0 %v1222
        %1232 = vmatprep.subr.mxu0 0.0
        %1233 = vmatpush1.msra.mxu0 %v1223
        %1234 = vmatprep.subr.mxu0 0.0
        %1235 = vmatpush1.msra.mxu0 0.0
        %1236 = vmatprep.subr.mxu0 0.0
        %1237 = vmatpush1.msra.mxu0 0.0
        %1238 = vmatprep.subr.mxu0 0.0
        %1239 = vmatpush1.msra.mxu0 0.0
        %1240 = vmatprep.subr.mxu0 0.0
        %1241 = vmatpush1.msra.mxu0 0.0
        %1242 = vmatprep.subr.mxu0 0.0
        %1243 = vmatpush1.msra.mxu0 0.0
        %1244 = vmatprep.subr.mxu0 0.0
        %1245 = vmatpush1.msra.mxu0 0.0
        %1246 = vmatprep.subr.mxu0 0.0
        %1247 = vmatpush1.msra.mxu0 0.0
        %1248 = vmatprep.subr.mxu0 0.0
        %1249 = vmatpush1.msra.mxu0 0.0
        %1250 = vmatprep.subr.mxu0 0.0
        %1251 = vmatpush1.msra.mxu0 0.0
        %1252 = vmatprep.subr.mxu0 0.0
        %1253 = vmatpush1.msra.mxu0 0.0
        %1254 = vmatprep.subr.mxu0 0.0
        %1255 = vmatpush1.msra.mxu0 0.0
        %1256 = vmatprep.subr.mxu0 0.0
        %1257 = vmatpush1.msra.mxu0 0.0
        %1258 = vmatprep.subr.mxu0 0.0
        %1259 = vmatpush1.msra.mxu0 0.0
        %1260 = vmatprep.subr.mxu0 0.0
        %1261 = vmatpush1.msra.mxu0 0.0
        %1262 = vmatprep.subr.mxu0 0.0
        %1263 = vmatpush1.msra.mxu0 0.0
        %1264 = vmatprep.subr.mxu0 0.0
        %1265 = vmatpush1.msra.mxu0 0.0
        %1266 = vmatprep.subr.mxu0 0.0
        %1267 = vmatpush1.msra.mxu0 0.0
        %1268 = vmatprep.subr.mxu0 0.0
        %1269 = vmatpush1.msra.mxu0 0.0
        %1270 = vmatprep.subr.mxu0 0.0
        %1271 = vmatpush1.msra.mxu0 0.0
        %1272 = vmatprep.subr.mxu0 0.0
        %1273 = vmatpush1.msra.mxu0 0.0
        %1274 = vmatprep.subr.mxu0 0.0
        %1275 = vmatpush1.msra.mxu0 0.0
        %1276 = vmatprep.subr.mxu0 0.0
        %1277 = vmatpush1.msra.mxu0 0.0
        %1278 = vmatprep.subr.mxu0 0.0
        %1279 = vmatpush1.msra.mxu0 0.0
        %1280 = vmatprep.subr.mxu0 0.0
        %1281 = vmatpush1.msra.mxu0 0.0
        %1282 = vmatprep.subr.mxu0 0.0
        %1283 = vmatpush1.msra.mxu0 0.0
        %1284 = vmatprep.subr.mxu0 0.0
        %1285 = vmatpush1.msra.mxu0 0.0
        %1286 = vmatprep.subr.mxu0 0.0
        %1287 = vmatpush1.msra.mxu0 0.0
        %1288 = vmatprep.subr.mxu0 0.0
        %1289 = vmatpush1.msra.mxu0 0.0
        %1290 = vmatprep.subr.mxu0 0.0
        %1291 = vmatpush1.msra.mxu0 0.0
        %1292 = vmatprep.subr.mxu0 0.0
        %1293 = vmatpush1.msra.mxu0 0.0
        %1294 = vmatprep.mubr.f32.mxu0 0.0
        %1295 = vmatmul.mubr.f32.gmra.mrb[0].mxu0 %v1225
        %v1296 = vpop.f32.mrb[0].mxu0
        %v1297 = vadd.f32 0.0, %v1296
        %v1298 = vpop.f32.mrb[0].mxu0
        %1299 = vmatprep.mubr.f32.mxu0 0.0
        %1300 = vmatmul.mubr.f32.gmra.mrb[0].mxu0 %v1228
        %v1301 = vpop.f32.mrb[0].mxu0
        %v1302 = vadd.f32 0.0, %v1301
        %v1303 = vpop.f32.mrb[0].mxu0
        %1304 = vdwg.mxu0
        %v1305 = vadd.f32 %v1217, %v1297
        %v1306 = vadd.f32 %v1218, %v1302
        %v1307 = vld [vmem:[%s253 + $0x5] sm:$0xff]
        %v1308 = vld [vmem:[%s253 + $0xd] sm:$0xff]
        %s1309 = scalar_lea.vmem [#allocation7], 192
        %v1310 = vld [vmem:[%s1309] sm:$0xff]
        %v1311 = vld [vmem:[%s1309 + $0x8] sm:$0xff]
        %v1313 = vsel %vm243, %v1307, 0
        %v1316 = vsel %vm243, %v1308, 0
        %1318 = vmatprep.subr.mxu0 0.0
        %1319 = vmatpush1.msra.mxu0 %v1310
        %1320 = vmatprep.subr.mxu0 0.0
        %1321 = vmatpush1.msra.mxu0 %v1311
        %1322 = vmatprep.subr.mxu0 0.0
        %1323 = vmatpush1.msra.mxu0 0.0
        %1324 = vmatprep.subr.mxu0 0.0
        %1325 = vmatpush1.msra.mxu0 0.0
        %1326 = vmatprep.subr.mxu0 0.0
        %1327 = vmatpush1.msra.mxu0 0.0
        %1328 = vmatprep.subr.mxu0 0.0
        %1329 = vmatpush1.msra.mxu0 0.0
        %1330 = vmatprep.subr.mxu0 0.0
        %1331 = vmatpush1.msra.mxu0 0.0
        %1332 = vmatprep.subr.mxu0 0.0
        %1333 = vmatpush1.msra.mxu0 0.0
        %1334 = vmatprep.subr.mxu0 0.0
        %1335 = vmatpush1.msra.mxu0 0.0
        %1336 = vmatprep.subr.mxu0 0.0
        %1337 = vmatpush1.msra.mxu0 0.0
        %1338 = vmatprep.subr.mxu0 0.0
        %1339 = vmatpush1.msra.mxu0 0.0
        %1340 = vmatprep.subr.mxu0 0.0
        %1341 = vmatpush1.msra.mxu0 0.0
        %1342 = vmatprep.subr.mxu0 0.0
        %1343 = vmatpush1.msra.mxu0 0.0
        %1344 = vmatprep.subr.mxu0 0.0
        %1345 = vmatpush1.msra.mxu0 0.0
        %1346 = vmatprep.subr.mxu0 0.0
        %1347 = vmatpush1.msra.mxu0 0.0
        %1348 = vmatprep.subr.mxu0 0.0
        %1349 = vmatpush1.msra.mxu0 0.0
        %1350 = vmatprep.subr.mxu0 0.0
        %1351 = vmatpush1.msra.mxu0 0.0
        %1352 = vmatprep.subr.mxu0 0.0
        %1353 = vmatpush1.msra.mxu0 0.0
        %1354 = vmatprep.subr.mxu0 0.0
        %1355 = vmatpush1.msra.mxu0 0.0
        %1356 = vmatprep.subr.mxu0 0.0
        %1357 = vmatpush1.msra.mxu0 0.0
        %1358 = vmatprep.subr.mxu0 0.0
        %1359 = vmatpush1.msra.mxu0 0.0
        %1360 = vmatprep.subr.mxu0 0.0
        %1361 = vmatpush1.msra.mxu0 0.0
        %1362 = vmatprep.subr.mxu0 0.0
        %1363 = vmatpush1.msra.mxu0 0.0
        %1364 = vmatprep.subr.mxu0 0.0
        %1365 = vmatpush1.msra.mxu0 0.0
        %1366 = vmatprep.subr.mxu0 0.0
        %1367 = vmatpush1.msra.mxu0 0.0
        %1368 = vmatprep.subr.mxu0 0.0
        %1369 = vmatpush1.msra.mxu0 0.0
        %1370 = vmatprep.subr.mxu0 0.0
        %1371 = vmatpush1.msra.mxu0 0.0
        %1372 = vmatprep.subr.mxu0 0.0
        %1373 = vmatpush1.msra.mxu0 0.0
        %1374 = vmatprep.subr.mxu0 0.0
        %1375 = vmatpush1.msra.mxu0 0.0
        %1376 = vmatprep.subr.mxu0 0.0
        %1377 = vmatpush1.msra.mxu0 0.0
        %1378 = vmatprep.subr.mxu0 0.0
        %1379 = vmatpush1.msra.mxu0 0.0
        %1380 = vmatprep.subr.mxu0 0.0
        %1381 = vmatpush1.msra.mxu0 0.0
        %1382 = vmatprep.mubr.f32.mxu0 0.0
        %1383 = vmatmul.mubr.f32.gmra.mrb[0].mxu0 %v1313
        %v1384 = vpop.f32.mrb[0].mxu0
        %v1385 = vadd.f32 0.0, %v1384
        %v1386 = vpop.f32.mrb[0].mxu0
        %1387 = vmatprep.mubr.f32.mxu0 0.0
        %1388 = vmatmul.mubr.f32.gmra.mrb[0].mxu0 %v1316
        %v1389 = vpop.f32.mrb[0].mxu0
        %v1390 = vadd.f32 0.0, %v1389
        %v1391 = vpop.f32.mrb[0].mxu0
        %1392 = vdwg.mxu0
        %v1393 = vadd.f32 %v1305, %v1385
        %v1394 = vadd.f32 %v1306, %v1390
        %v1395 = vld [vmem:[%s253 + $0x6] sm:$0xff]
        %v1396 = vld [vmem:[%s253 + $0xe] sm:$0xff]
        %s1397 = scalar_lea.vmem [#allocation7], 208
        %v1398 = vld [vmem:[%s1397] sm:$0xff]
        %v1399 = vld [vmem:[%s1397 + $0x8] sm:$0xff]
        %v1401 = vsel %vm243, %v1395, 0
        %v1404 = vsel %vm243, %v1396, 0
        %1406 = vmatprep.subr.mxu0 0.0
        %1407 = vmatpush1.msra.mxu0 %v1398
        %1408 = vmatprep.subr.mxu0 0.0
        %1409 = vmatpush1.msra.mxu0 %v1399
        %1410 = vmatprep.subr.mxu0 0.0
        %1411 = vmatpush1.msra.mxu0 0.0
        %1412 = vmatprep.subr.mxu0 0.0
        %1413 = vmatpush1.msra.mxu0 0.0
        %1414 = vmatprep.subr.mxu0 0.0
        %1415 = vmatpush1.msra.mxu0 0.0
        %1416 = vmatprep.subr.mxu0 0.0
        %1417 = vmatpush1.msra.mxu0 0.0
        %1418 = vmatprep.subr.mxu0 0.0
        %1419 = vmatpush1.msra.mxu0 0.0
        %1420 = vmatprep.subr.mxu0 0.0
        %1421 = vmatpush1.msra.mxu0 0.0
        %1422 = vmatprep.subr.mxu0 0.0
        %1423 = vmatpush1.msra.mxu0 0.0
        %1424 = vmatprep.subr.mxu0 0.0
        %1425 = vmatpush1.msra.mxu0 0.0
        %1426 = vmatprep.subr.mxu0 0.0
        %1427 = vmatpush1.msra.mxu0 0.0
        %1428 = vmatprep.subr.mxu0 0.0
        %1429 = vmatpush1.msra.mxu0 0.0
        %1430 = vmatprep.subr.mxu0 0.0
        %1431 = vmatpush1.msra.mxu0 0.0
        %1432 = vmatprep.subr.mxu0 0.0
        %1433 = vmatpush1.msra.mxu0 0.0
        %1434 = vmatprep.subr.mxu0 0.0
        %1435 = vmatpush1.msra.mxu0 0.0
        %1436 = vmatprep.subr.mxu0 0.0
        %1437 = vmatpush1.msra.mxu0 0.0
        %1438 = vmatprep.subr.mxu0 0.0
        %1439 = vmatpush1.msra.mxu0 0.0
        %1440 = vmatprep.subr.mxu0 0.0
        %1441 = vmatpush1.msra.mxu0 0.0
        %1442 = vmatprep.subr.mxu0 0.0
        %1443 = vmatpush1.msra.mxu0 0.0
        %1444 = vmatprep.subr.mxu0 0.0
        %1445 = vmatpush1.msra.mxu0 0.0
        %1446 = vmatprep.subr.mxu0 0.0
        %1447 = vmatpush1.msra.mxu0 0.0
        %1448 = vmatprep.subr.mxu0 0.0
        %1449 = vmatpush1.msra.mxu0 0.0
        %1450 = vmatprep.subr.mxu0 0.0
        %1451 = vmatpush1.msra.mxu0 0.0
        %1452 = vmatprep.subr.mxu0 0.0
        %1453 = vmatpush1.msra.mxu0 0.0
        %1454 = vmatprep.subr.mxu0 0.0
        %1455 = vmatpush1.msra.mxu0 0.0
        %1456 = vmatprep.subr.mxu0 0.0
        %1457 = vmatpush1.msra.mxu0 0.0
        %1458 = vmatprep.subr.mxu0 0.0
        %1459 = vmatpush1.msra.mxu0 0.0
        %1460 = vmatprep.subr.mxu0 0.0
        %1461 = vmatpush1.msra.mxu0 0.0
        %1462 = vmatprep.subr.mxu0 0.0
        %1463 = vmatpush1.msra.mxu0 0.0
        %1464 = vmatprep.subr.mxu0 0.0
        %1465 = vmatpush1.msra.mxu0 0.0
        %1466 = vmatprep.subr.mxu0 0.0
        %1467 = vmatpush1.msra.mxu0 0.0
        %1468 = vmatprep.subr.mxu0 0.0
        %1469 = vmatpush1.msra.mxu0 0.0
        %1470 = vmatprep.mubr.f32.mxu0 0.0
        %1471 = vmatmul.mubr.f32.gmra.mrb[0].mxu0 %v1401
        %v1472 = vpop.f32.mrb[0].mxu0
        %v1473 = vadd.f32 0.0, %v1472
        %v1474 = vpop.f32.mrb[0].mxu0
        %1475 = vmatprep.mubr.f32.mxu0 0.0
        %1476 = vmatmul.mubr.f32.gmra.mrb[0].mxu0 %v1404
        %v1477 = vpop.f32.mrb[0].mxu0
        %v1478 = vadd.f32 0.0, %v1477
        %v1479 = vpop.f32.mrb[0].mxu0
        %1480 = vdwg.mxu0
        %v1481 = vadd.f32 %v1393, %v1473
        %v1482 = vadd.f32 %v1394, %v1478
        %s1483 = sld [smem:[#allocation9]]
        %s1484 = sld [smem:[#allocation9 + $0x1]]
        %v1485 = vstv %s1483
        %v1486 = vmul.f32 %v1481, %v1485
        %v1487 = vmul.f32 %v1482, %v1485
        %v1488 = vstv %s1484
        %v1489 = vadd.f32 %v1486, %v1488
        %v1490 = vadd.f32 %v1487, %v1488
        %v1491 = vxor.u32 %v1489, 2147483648
        %v1492 = vxor.u32 %v1490, 2147483648
        %v1493 = vmul.f32 %v1491, 1.442695
        %v1494 = vpow.pop %v1493
        %v1495 = vmul.f32 %v1492, 1.442695
        %v1496 = vpow.pop %v1495
        %v1497 = vadd.f32 %v1494, 1.0
        %v1498 = vadd.f32 %v1496, 1.0
        %v1499 = vrcp.pop %v1497
        %v1500 = vmul.f32 1.0, %v1499
        %v1501 = vrcp.pop %v1498
        %v1502 = vmul.f32 1.0, %v1501
        %v1503 = vld [vmem:[%s186] sm:$0xff]
        %v1504 = vld [vmem:[%s186 + $0x8] sm:$0xff]
        %v1505 = vmul.f32 %v1503, %v1500
        %v1506 = vmul.f32 %v1504, %v1502
        %1507 = vst.msk [vmem:[%s217] sm:$0xff] %vm243, %v1505
        %1508 = vst.msk [vmem:[%s217 + $0x8] sm:$0xff] %vm243, %v1506
        %v1509 = vld [vmem:[%s220] sm:$0xff]
        %v1510 = vld [vmem:[%s220 + $0x8] sm:$0xff]
        %v1511 = vmul.f32 %v1509, %v1500
        %v1512 = vmul.f32 %v1510, %v1502
        %s1513 = scalar_lea.vmem %s217, 16 [#allocation10]
        %1514 = vst.msk [vmem:[%s1513] sm:$0xff] %vm243, %v1511
        %1515 = vst.msk [vmem:[%s1513 + $0x8] sm:$0xff] %vm243, %v1512
        %v1516 = vld [vmem:[%s227] sm:$0xff]
        %v1517 = vld [vmem:[%s227 + $0x8] sm:$0xff]
        %v1518 = vmul.f32 %v1516, %v1500
        %v1519 = vmul.f32 %v1517, %v1502
        %s1520 = scalar_lea.vmem %s217, 32 [#allocation10]
        %1521 = vst.msk [vmem:[%s1520] sm:$0xff] %vm243, %v1518
        %1522 = vst.msk [vmem:[%s1520 + $0x8] sm:$0xff] %vm243, %v1519
        %v1523 = vld [vmem:[%s234] sm:$0xff]
        %v1524 = vld [vmem:[%s234 + $0x8] sm:$0xff]
        %v1525 = vmul.f32 %v1523, %v1500
        %v1526 = vmul.f32 %v1524, %v1502
        %s1527 = scalar_lea.vmem %s217, 48 [#allocation10]
        %1528 = vst.msk [vmem:[%s1527] sm:$0xff] %vm243, %v1525
        %1529 = vst.msk [vmem:[%s1527 + $0x8] sm:$0xff] %vm243, %v1526
        %s1530 = sand.u32 %s98, 1
        %s1531 = scalar_lea.sflag [#allocation5], %s1530
        %s1532 = sand.u32 %s98, 1
        %s1533 = smul.addr %s1532, 64
        %s1534 = scalar_lea.vmem [#allocation10], %s1533
        // Predicated region
        $region45: #{tpu_custom_call.1} parent=31 // pred_check
          %p1535 = pneg %p108
        $region46: #{tpu_custom_call.1} parent=31 // pred_check_branch
          %1537 = sbr.rel (%p1535) target = $region48
        $region47: #{tpu_custom_call.1} parent=31 // pred_region
          %s1539 = ssub.s32 1024, 1024
          %1540 = vsyncadd %s1531, %s1539
          %s1541 = smul.addr %s22, 8
          %s1542 = smul.addr %s1541, 128
          %s1543 = scalar_lea.hbm %s3, %s1542
          %s1544 = sshll.u32 %s1534, 4
          %s1545 = int_to_ptr.vmem [resolvable:$true] %s1544
          %1550 = dma.vmem_to_hbm [thread:$0]  %s1545, 1024, %s1543, %s1531, 128, 128, 8
        $region48: #{tpu_custom_call.1} parent=31 // pred_fallthru
          _
      $region32: #{tpu_custom_call.1} parent=5 // pred_fallthru
        _
      %p1551 = scmp.le.s32.totalorder 2, %s17
      // Predicated region
      $region49: #{tpu_custom_call.1} parent=5 // pred_check
        %p1552 = pneg %p1551
      $region50: #{tpu_custom_call.1} parent=5 // pred_check_branch
        %1554 = sbr.rel (%p1552) target = $region52
      $region51: #{tpu_custom_call.1} parent=5 // pred_region
        %s1555 = ssub.s32 %s17, 2
        // Predicated region
        $region53: #{tpu_custom_call.1} parent=51 // pred_check
          %p1556 = pneg %p114
        $region54: #{tpu_custom_call.1} parent=51 // pred_check_branch
          %1558 = sbr.rel (%p1556) target = $region56
        $region55: #{tpu_custom_call.1} parent=51 // pred_region
          %s1559 = sand.u32 %s99, 1
          %s1560 = scalar_lea.sflag [#allocation5], %s1559
          %s1561 = sand.u32 %s99, 1
          %s1562 = smul.addr %s1561, 64
          %s1563 = scalar_lea.vmem [#allocation10], %s1562
          %1564 = dma.done %s1560, 1024
        $region56: #{tpu_custom_call.1} parent=51 // pred_fallthru
          _
      $region52: #{tpu_custom_call.1} parent=5 // pred_fallthru
        _
    $region6: #{tpu_custom_call.1} parent=1 // loop_footer
      %s21 = sadd.s32 1, %s17
    $region7: #{tpu_custom_call.1} parent=1 // loop_footer_branch
      %16 = sbr.rel target = $region3
    $region8: #{tpu_custom_call.1} parent=1 // loop_exit
      _
    %1565 = vsyncpa [#allocation4], 1
    %s1566 = scalar_lea.sflag [#allocation4], 1
    %1567 = vsyncpa %s1566, 1
    %1568 = vsyncpa [#allocation8], 1
    %1569 = vsyncpa [#allocation5], 1
    %s1570 = scalar_lea.sflag [#allocation5], 1
    %1571 = vsyncpa %s1570, 1
    %1572 = vsyncpa [#allocation6], 1
    %s1573 = scalar_lea.sflag [#allocation6], 1
    %1574 = vsyncpa %s1573, 1

</llo_original>
